<compile_context>
chip_gen: v7x
topology: tpu7x:2x2x1
jax: 0.10.0
libtpu: 0.0.40
codegen_flags: <defaults>
</compile_context>

<pallas_src>
import jax
import jax.numpy as jnp
from jax import lax
from jax.experimental import pallas as pl
from jax.experimental.pallas import tpu as pltpu

LN_EPS = 1e-12  # config['ln-epsilon']


def _bert_embeddings_kernel(
    ids_ref,                 # SMEM scalar prefetch: (B, S) int32 word ids
    tt_ref,                  # VMEM (1, S, 1) int32 token-type ids for this batch row
    pos_ref,                 # VMEM (S, H)   position table rows [0, S)
    type_ref,                # VMEM (T, H)   token-type table
    gamma_ref, beta_ref,     # VMEM (1, H)   LayerNorm params
    word_hbm,                # HBM (pl.ANY)  (V, H) word table, row-gathered by DMA
    out_ref,                 # VMEM (1, S, H)
    gbuf,                    # VMEM scratch (2, CH, H): double-buffered gathered rows
    sem,                     # DMA semaphores (2, CH)
    pt_ref,                  # VMEM scratch (S, H) f32: pos + token-type embeddings
):
    b = pl.program_id(0)
    S, H = pt_ref.shape
    T = type_ref.shape[0]
    V = word_hbm.shape[0]
    CH = gbuf.shape[1]
    n_chunks = S // CH

    def start_chunk(c, slot):
        base = c * CH
        for r in range(CH):                       # static unroll, CH row DMAs in flight
            wid = ids_ref[b, base + r]
            wid = jnp.minimum(jnp.maximum(wid, 0), V - 1)   # no OOB DMA on bad ids
            pltpu.make_async_copy(
                word_hbm.at[pl.ds(wid, 1), :],
                gbuf.at[slot, pl.ds(r, 1), :],
                sem.at[slot, r],
            ).start()

    def wait_chunk(slot):
        for r in range(CH):
            pltpu.make_async_copy(
                word_hbm.at[pl.ds(0, 1), :],      # src index irrelevant for wait
                gbuf.at[slot, pl.ds(r, 1), :],
                sem.at[slot, r],
            ).wait()

    # Kick off the gather of the first chunk of word rows.
    start_chunk(0, 0)

    # Vector pass (overlaps chunk-0 DMAs): position + token-type embeddings.
    # T is tiny (2 for BERT) -> pure VPU mask-select, no per-row scalar gather.
    tt = tt_ref[0]                                # (S, 1) int32
    pt = pos_ref[...].astype(jnp.float32)         # (S, H)
    for t in range(T):
        mask = (tt == t).astype(jnp.float32)      # (S, 1)
        pt = pt + mask * type_ref[pl.ds(t, 1), :].astype(jnp.float32)
    pt_ref[...] = pt

    gamma = gamma_ref[...].astype(jnp.float32)
    beta = beta_ref[...].astype(jnp.float32)

    def chunk_body(c, carry):
        slot = lax.rem(c, 2)
        wait_chunk(slot)

        # Prefetch the next chunk of word rows while we LayerNorm this one.
        @pl.when(c + 1 < n_chunks)
        def _():
            start_chunk(c + 1, 1 - slot)

        base = pl.multiple_of(c * CH, CH)
        x = gbuf[slot].astype(jnp.float32) + pt_ref[pl.ds(base, CH), :]   # (CH, H)

        # LayerNorm over hidden dim (biased variance, eps inside rsqrt).
        mean = jnp.mean(x, axis=-1, keepdims=True)
        var = jnp.mean(jnp.square(x - mean), axis=-1, keepdims=True)
        y = (x - mean) * lax.rsqrt(var + LN_EPS)
        y = y * gamma + beta

        # TODO(synk): nn.Dropout is identity in eval mode; training-mode dropout
        # would use pltpu.prng_seed + pltpu.prng_random_bits for an in-kernel mask.
        out_ref[0, pl.ds(base, CH), :] = y.astype(out_ref.dtype)
        return carry

    lax.fori_loop(0, n_chunks, chunk_body, 0)


def bert_embeddings(input_ids, token_type_ids, word_emb, pos_emb, type_emb,
                    gamma, beta, *, chunk_rows=8):
    B, S = input_ids.shape
    V, H = word_emb.shape
    P = pos_emb.shape[0]
    T = type_emb.shape[0]
    assert S <= P, "sequence length exceeds max_position_embeddings"
    assert S % chunk_rows == 0, "S must be a multiple of chunk_rows"

    gamma2 = gamma.reshape(1, H)
    beta2 = beta.reshape(1, H)
    tt3 = token_type_ids.astype(jnp.int32).reshape(B, S, 1)

    grid_spec = pltpu.PrefetchScalarGridSpec(
        num_scalar_prefetch=1,            # input_ids -> SMEM, drives the row DMAs
        grid=(B,),
        in_specs=[
            pl.BlockSpec((1, S, 1), lambda b, ids: (b, 0, 0)),   # token_type_ids (this row)
            pl.BlockSpec((S, H), lambda b, ids: (0, 0)),         # first S rows of pos table
            pl.BlockSpec((T, H), lambda b, ids: (0, 0)),         # token-type table (tiny)
            pl.BlockSpec((1, H), lambda b, ids: (0, 0)),         # LayerNorm gamma
            pl.BlockSpec((1, H), lambda b, ids: (0, 0)),         # LayerNorm beta
            pl.BlockSpec(memory_space=pl.ANY),                   # word table stays in HBM
        ],
        out_specs=pl.BlockSpec((1, S, H), lambda b, ids: (b, 0, 0)),
        scratch_shapes=[
            pltpu.VMEM((2, chunk_rows, H), word_emb.dtype),      # double-buffered gather
            pltpu.SemaphoreType.DMA((2, chunk_rows)),
            pltpu.VMEM((S, H), jnp.float32),                     # pos + token-type
        ],
    )

    return pl.pallas_call(
        _bert_embeddings_kernel,
        grid_spec=grid_spec,
        out_shape=jax.ShapeDtypeStruct((B, S, H), jnp.float32),
        compiler_params=pltpu.CompilerParams(
            dimension_semantics=("parallel",),   # batch rows independent -> v7x 2 TCs
        ),
    )(input_ids.astype(jnp.int32), tt3, pos_emb, type_emb, gamma2, beta2, word_emb)


def bert_embeddings_ref(input_ids, token_type_ids, word_emb, pos_emb, type_emb, gamma, beta):
    B, S = input_ids.shape
    we = word_emb[input_ids]                       # (B, S, H)
    pe = pos_emb[jnp.arange(S)][None, :, :]        # (1, S, H) broadcast over batch
    te = type_emb[token_type_ids]                  # (B, S, H)
    x = we + pe + te
    mean = jnp.mean(x, axis=-1, keepdims=True)
    var = jnp.mean(jnp.square(x - mean), axis=-1, keepdims=True)
    y = (x - mean) / jnp.sqrt(var + LN_EPS)
    return y * gamma + beta


if __name__ == "__main__":
    # Small, BERT-consistent synthetic config (H multiple of 128 for lane-dense stores,
    # S multiple of chunk_rows so the double-buffered gather loop is exercised).
    B, S, H = 2, 16, 128
    vocab_size = 64
    max_position_embeddings = 32
    type_vocab_size = 2

    key = jax.random.PRNGKey(0)
    k_w, k_p, k_t, k_g, k_b, k_ids, k_tt = jax.random.split(key, 7)

    word_emb = jax.random.normal(k_w, (vocab_size, H), dtype=jnp.float32) * 0.02
    pos_emb = jax.random.normal(k_p, (max_position_embeddings, H), dtype=jnp.float32) * 0.02
    type_emb = jax.random.normal(k_t, (type_vocab_size, H), dtype=jnp.float32) * 0.02
    gamma = 1.0 + 0.1 * jax.random.normal(k_g, (H,), dtype=jnp.float32)
    beta = 0.1 * jax.random.normal(k_b, (H,), dtype=jnp.float32)

    input_ids = jax.random.randint(k_ids, (B, S), 0, vocab_size, dtype=jnp.int32)
    token_type_ids = jax.random.randint(k_tt, (B, S), 0, type_vocab_size, dtype=jnp.int32)

    out = bert_embeddings(input_ids, token_type_ids, word_emb, pos_emb, type_emb, gamma, beta)
    out = jax.block_until_ready(out)

    ref = bert_embeddings_ref(input_ids, token_type_ids, word_emb, pos_emb, type_emb, gamma, beta)
    assert out.shape == (B, S, H)
    assert jnp.allclose(out, ref, atol=1e-5, rtol=1e-5), "mismatch vs pure-JAX reference"

    print("KERNEL_OK")
</pallas_src>

<mosaic_0001>
module attributes {stable_mosaic.version = 11 : i64} {
  func.func @_bert_embeddings_kernel(%arg0: i32, %arg1: memref<2x16xi32, #tpu.memory_space<smem>>, %arg2: memref<1x16x1xi32, #tpu.memory_space<vmem>>, %arg3: memref<16x128xf32, #tpu.memory_space<vmem>>, %arg4: memref<2x128xf32, #tpu.memory_space<vmem>>, %arg5: memref<1x128xf32, #tpu.memory_space<vmem>>, %arg6: memref<1x128xf32, #tpu.memory_space<vmem>>, %arg7: memref<64x128xf32, #tpu.memory_space<any>>, %arg8: memref<1x16x128xf32, #tpu.memory_space<vmem>>, %arg9: memref<2x8x128xf32, #tpu.memory_space<vmem>>, %arg10: memref<2x8x!tpu.dma_semaphore, #tpu.memory_space<semaphore_mem>>, %arg11: memref<16x128xf32, #tpu.memory_space<vmem>>) attributes {dimension_semantics = [#tpu.dimension_semantics<parallel>], iteration_bounds = array<i64: 2>, scalar_prefetch = 1 : i64, scratch_operands = 3 : i64, tpu.core_type = #tpu.core_type<tc>, window_params = [{transform_indices = @transform_0, window_bounds = array<i64: 1, 16, 1>}, {transform_indices = @transform_1, window_bounds = array<i64: 16, 128>}, {pipeline_mode = #tpu.pipeline_mode<synchronous>, transform_indices = @transform_2, window_bounds = array<i64: 2, 128>}, {pipeline_mode = #tpu.pipeline_mode<synchronous>, transform_indices = @transform_3, window_bounds = array<i64: 1, 128>}, {pipeline_mode = #tpu.pipeline_mode<synchronous>, transform_indices = @transform_4, window_bounds = array<i64: 1, 128>}, {}, {transform_indices = @transform_6, window_bounds = array<i64: 1, 16, 128>}]} {
    %0 = arith.index_cast %arg0 : i32 to index
    %c0 = arith.constant 0 : index
    %1 = memref.load %arg1[%0, %c0] : memref<2x16xi32, #tpu.memory_space<smem>>
    %c0_i32 = arith.constant 0 : i32
    %2 = arith.maxsi %1, %c0_i32 : i32
    %c63_i32 = arith.constant 63 : i32
    %3 = arith.minsi %2, %c63_i32 : i32
    %c0_i32_0 = arith.constant 0 : i32
    %c0_i32_1 = arith.constant 0 : i32
    %c0_i32_2 = arith.constant 0 : i32
    %c0_i32_3 = arith.constant 0 : i32
    %4 = tpu.memref_slice %arg7[%3, %c0_i32_3] : memref<64x128xf32, #tpu.memory_space<any>> -> memref<1x128xf32, #tpu.memory_space<any>>
    %c0_i32_4 = arith.constant 0 : i32
    %c0_i32_5 = arith.constant 0 : i32
    %5 = tpu.memref_slice %arg9[%c0_i32_0, %c0_i32_4, %c0_i32_5] : memref<2x8x128xf32, #tpu.memory_space<vmem>> -> memref<1x1x128xf32, #tpu.memory_space<vmem>>
    %6 = tpu.memref_squeeze %5 : memref<1x1x128xf32, #tpu.memory_space<vmem>> -> memref<1x128xf32, #tpu.memory_space<vmem>>
    %7 = tpu.memref_slice %arg10[%c0_i32_1, %c0_i32_2] : memref<2x8x!tpu.dma_semaphore, #tpu.memory_space<semaphore_mem>> -> memref<1x1x!tpu.dma_semaphore, #tpu.memory_space<semaphore_mem>>
    %8 = tpu.memref_squeeze %7 : memref<1x1x!tpu.dma_semaphore, #tpu.memory_space<semaphore_mem>> -> memref<!tpu.dma_semaphore, #tpu.memory_space<semaphore_mem>>
    tpu.enqueue_dma source(%4 : memref<1x128xf32, #tpu.memory_space<any>>) target(%6 : memref<1x128xf32, #tpu.memory_space<vmem>>) target_semaphore(%8 : memref<!tpu.dma_semaphore, #tpu.memory_space<semaphore_mem>>)
    %9 = arith.index_cast %arg0 : i32 to index
    %c1 = arith.constant 1 : index
    %10 = memref.load %arg1[%9, %c1] : memref<2x16xi32, #tpu.memory_space<smem>>
    %c0_i32_6 = arith.constant 0 : i32
    %11 = arith.maxsi %10, %c0_i32_6 : i32
    %c63_i32_7 = arith.constant 63 : i32
    %12 = arith.minsi %11, %c63_i32_7 : i32
    %c0_i32_8 = arith.constant 0 : i32
    %c0_i32_9 = arith.constant 0 : i32
    %c1_i32 = arith.constant 1 : i32
    %c0_i32_10 = arith.constant 0 : i32
    %13 = tpu.memref_slice %arg7[%12, %c0_i32_10] : memref<64x128xf32, #tpu.memory_space<any>> -> memref<1x128xf32, #tpu.memory_space<any>>
    %c1_i32_11 = arith.constant 1 : i32
    %c0_i32_12 = arith.constant 0 : i32
    %14 = tpu.memref_slice %arg9[%c0_i32_8, %c1_i32_11, %c0_i32_12] : memref<2x8x128xf32, #tpu.memory_space<vmem>> -> memref<1x1x128xf32, #tpu.memory_space<vmem>>
    %15 = tpu.memref_squeeze %14 : memref<1x1x128xf32, #tpu.memory_space<vmem>> -> memref<1x128xf32, #tpu.memory_space<vmem>>
    %16 = tpu.memref_slice %arg10[%c0_i32_9, %c1_i32] : memref<2x8x!tpu.dma_semaphore, #tpu.memory_space<semaphore_mem>> -> memref<1x1x!tpu.dma_semaphore, #tpu.memory_space<semaphore_mem>>
    %17 = tpu.memref_squeeze %16 : memref<1x1x!tpu.dma_semaphore, #tpu.memory_space<semaphore_mem>> -> memref<!tpu.dma_semaphore, #tpu.memory_space<semaphore_mem>>
    tpu.enqueue_dma source(%13 : memref<1x128xf32, #tpu.memory_space<any>>) target(%15 : memref<1x128xf32, #tpu.memory_space<vmem>>) target_semaphore(%17 : memref<!tpu.dma_semaphore, #tpu.memory_space<semaphore_mem>>)
    %18 = arith.index_cast %arg0 : i32 to index
    %c2 = arith.constant 2 : index
    %19 = memref.load %arg1[%18, %c2] : memref<2x16xi32, #tpu.memory_space<smem>>
    %c0_i32_13 = arith.constant 0 : i32
    %20 = arith.maxsi %19, %c0_i32_13 : i32
    %c63_i32_14 = arith.constant 63 : i32
    %21 = arith.minsi %20, %c63_i32_14 : i32
    %c0_i32_15 = arith.constant 0 : i32
    %c0_i32_16 = arith.constant 0 : i32
    %c2_i32 = arith.constant 2 : i32
    %c0_i32_17 = arith.constant 0 : i32
    %22 = tpu.memref_slice %arg7[%21, %c0_i32_17] : memref<64x128xf32, #tpu.memory_space<any>> -> memref<1x128xf32, #tpu.memory_space<any>>
    %c2_i32_18 = arith.constant 2 : i32
    %c0_i32_19 = arith.constant 0 : i32
    %23 = tpu.memref_slice %arg9[%c0_i32_15, %c2_i32_18, %c0_i32_19] : memref<2x8x128xf32, #tpu.memory_space<vmem>> -> memref<1x1x128xf32, #tpu.memory_space<vmem>>
    %24 = tpu.memref_squeeze %23 : memref<1x1x128xf32, #tpu.memory_space<vmem>> -> memref<1x128xf32, #tpu.memory_space<vmem>>
    %25 = tpu.memref_slice %arg10[%c0_i32_16, %c2_i32] : memref<2x8x!tpu.dma_semaphore, #tpu.memory_space<semaphore_mem>> -> memref<1x1x!tpu.dma_semaphore, #tpu.memory_space<semaphore_mem>>
    %26 = tpu.memref_squeeze %25 : memref<1x1x!tpu.dma_semaphore, #tpu.memory_space<semaphore_mem>> -> memref<!tpu.dma_semaphore, #tpu.memory_space<semaphore_mem>>
    tpu.enqueue_dma source(%22 : memref<1x128xf32, #tpu.memory_space<any>>) target(%24 : memref<1x128xf32, #tpu.memory_space<vmem>>) target_semaphore(%26 : memref<!tpu.dma_semaphore, #tpu.memory_space<semaphore_mem>>)
    %27 = arith.index_cast %arg0 : i32 to index
    %c3 = arith.constant 3 : index
    %28 = memref.load %arg1[%27, %c3] : memref<2x16xi32, #tpu.memory_space<smem>>
    %c0_i32_20 = arith.constant 0 : i32
    %29 = arith.maxsi %28, %c0_i32_20 : i32
    %c63_i32_21 = arith.constant 63 : i32
    %30 = arith.minsi %29, %c63_i32_21 : i32
    %c0_i32_22 = arith.constant 0 : i32
    %c0_i32_23 = arith.constant 0 : i32
    %c3_i32 = arith.constant 3 : i32
    %c0_i32_24 = arith.constant 0 : i32
    %31 = tpu.memref_slice %arg7[%30, %c0_i32_24] : memref<64x128xf32, #tpu.memory_space<any>> -> memref<1x128xf32, #tpu.memory_space<any>>
    %c3_i32_25 = arith.constant 3 : i32
    %c0_i32_26 = arith.constant 0 : i32
    %32 = tpu.memref_slice %arg9[%c0_i32_22, %c3_i32_25, %c0_i32_26] : memref<2x8x128xf32, #tpu.memory_space<vmem>> -> memref<1x1x128xf32, #tpu.memory_space<vmem>>
    %33 = tpu.memref_squeeze %32 : memref<1x1x128xf32, #tpu.memory_space<vmem>> -> memref<1x128xf32, #tpu.memory_space<vmem>>
    %34 = tpu.memref_slice %arg10[%c0_i32_23, %c3_i32] : memref<2x8x!tpu.dma_semaphore, #tpu.memory_space<semaphore_mem>> -> memref<1x1x!tpu.dma_semaphore, #tpu.memory_space<semaphore_mem>>
    %35 = tpu.memref_squeeze %34 : memref<1x1x!tpu.dma_semaphore, #tpu.memory_space<semaphore_mem>> -> memref<!tpu.dma_semaphore, #tpu.memory_space<semaphore_mem>>
    tpu.enqueue_dma source(%31 : memref<1x128xf32, #tpu.memory_space<any>>) target(%33 : memref<1x128xf32, #tpu.memory_space<vmem>>) target_semaphore(%35 : memref<!tpu.dma_semaphore, #tpu.memory_space<semaphore_mem>>)
    %36 = arith.index_cast %arg0 : i32 to index
    %c4 = arith.constant 4 : index
    %37 = memref.load %arg1[%36, %c4] : memref<2x16xi32, #tpu.memory_space<smem>>
    %c0_i32_27 = arith.constant 0 : i32
    %38 = arith.maxsi %37, %c0_i32_27 : i32
    %c63_i32_28 = arith.constant 63 : i32
    %39 = arith.minsi %38, %c63_i32_28 : i32
    %c0_i32_29 = arith.constant 0 : i32
    %c0_i32_30 = arith.constant 0 : i32
    %c4_i32 = arith.constant 4 : i32
    %c0_i32_31 = arith.constant 0 : i32
    %40 = tpu.memref_slice %arg7[%39, %c0_i32_31] : memref<64x128xf32, #tpu.memory_space<any>> -> memref<1x128xf32, #tpu.memory_space<any>>
    %c4_i32_32 = arith.constant 4 : i32
    %c0_i32_33 = arith.constant 0 : i32
    %41 = tpu.memref_slice %arg9[%c0_i32_29, %c4_i32_32, %c0_i32_33] : memref<2x8x128xf32, #tpu.memory_space<vmem>> -> memref<1x1x128xf32, #tpu.memory_space<vmem>>
    %42 = tpu.memref_squeeze %41 : memref<1x1x128xf32, #tpu.memory_space<vmem>> -> memref<1x128xf32, #tpu.memory_space<vmem>>
    %43 = tpu.memref_slice %arg10[%c0_i32_30, %c4_i32] : memref<2x8x!tpu.dma_semaphore, #tpu.memory_space<semaphore_mem>> -> memref<1x1x!tpu.dma_semaphore, #tpu.memory_space<semaphore_mem>>
    %44 = tpu.memref_squeeze %43 : memref<1x1x!tpu.dma_semaphore, #tpu.memory_space<semaphore_mem>> -> memref<!tpu.dma_semaphore, #tpu.memory_space<semaphore_mem>>
    tpu.enqueue_dma source(%40 : memref<1x128xf32, #tpu.memory_space<any>>) target(%42 : memref<1x128xf32, #tpu.memory_space<vmem>>) target_semaphore(%44 : memref<!tpu.dma_semaphore, #tpu.memory_space<semaphore_mem>>)
    %45 = arith.index_cast %arg0 : i32 to index
    %c5 = arith.constant 5 : index
    %46 = memref.load %arg1[%45, %c5] : memref<2x16xi32, #tpu.memory_space<smem>>
    %c0_i32_34 = arith.constant 0 : i32
    %47 = arith.maxsi %46, %c0_i32_34 : i32
    %c63_i32_35 = arith.constant 63 : i32
    %48 = arith.minsi %47, %c63_i32_35 : i32
    %c0_i32_36 = arith.constant 0 : i32
    %c0_i32_37 = arith.constant 0 : i32
    %c5_i32 = arith.constant 5 : i32
    %c0_i32_38 = arith.constant 0 : i32
    %49 = tpu.memref_slice %arg7[%48, %c0_i32_38] : memref<64x128xf32, #tpu.memory_space<any>> -> memref<1x128xf32, #tpu.memory_space<any>>
    %c5_i32_39 = arith.constant 5 : i32
    %c0_i32_40 = arith.constant 0 : i32
    %50 = tpu.memref_slice %arg9[%c0_i32_36, %c5_i32_39, %c0_i32_40] : memref<2x8x128xf32, #tpu.memory_space<vmem>> -> memref<1x1x128xf32, #tpu.memory_space<vmem>>
    %51 = tpu.memref_squeeze %50 : memref<1x1x128xf32, #tpu.memory_space<vmem>> -> memref<1x128xf32, #tpu.memory_space<vmem>>
    %52 = tpu.memref_slice %arg10[%c0_i32_37, %c5_i32] : memref<2x8x!tpu.dma_semaphore, #tpu.memory_space<semaphore_mem>> -> memref<1x1x!tpu.dma_semaphore, #tpu.memory_space<semaphore_mem>>
    %53 = tpu.memref_squeeze %52 : memref<1x1x!tpu.dma_semaphore, #tpu.memory_space<semaphore_mem>> -> memref<!tpu.dma_semaphore, #tpu.memory_space<semaphore_mem>>
    tpu.enqueue_dma source(%49 : memref<1x128xf32, #tpu.memory_space<any>>) target(%51 : memref<1x128xf32, #tpu.memory_space<vmem>>) target_semaphore(%53 : memref<!tpu.dma_semaphore, #tpu.memory_space<semaphore_mem>>)
    %54 = arith.index_cast %arg0 : i32 to index
    %c6 = arith.constant 6 : index
    %55 = memref.load %arg1[%54, %c6] : memref<2x16xi32, #tpu.memory_space<smem>>
    %c0_i32_41 = arith.constant 0 : i32
    %56 = arith.maxsi %55, %c0_i32_41 : i32
    %c63_i32_42 = arith.constant 63 : i32
    %57 = arith.minsi %56, %c63_i32_42 : i32
    %c0_i32_43 = arith.constant 0 : i32
    %c0_i32_44 = arith.constant 0 : i32
    %c6_i32 = arith.constant 6 : i32
    %c0_i32_45 = arith.constant 0 : i32
    %58 = tpu.memref_slice %arg7[%57, %c0_i32_45] : memref<64x128xf32, #tpu.memory_space<any>> -> memref<1x128xf32, #tpu.memory_space<any>>
    %c6_i32_46 = arith.constant 6 : i32
    %c0_i32_47 = arith.constant 0 : i32
    %59 = tpu.memref_slice %arg9[%c0_i32_43, %c6_i32_46, %c0_i32_47] : memref<2x8x128xf32, #tpu.memory_space<vmem>> -> memref<1x1x128xf32, #tpu.memory_space<vmem>>
    %60 = tpu.memref_squeeze %59 : memref<1x1x128xf32, #tpu.memory_space<vmem>> -> memref<1x128xf32, #tpu.memory_space<vmem>>
    %61 = tpu.memref_slice %arg10[%c0_i32_44, %c6_i32] : memref<2x8x!tpu.dma_semaphore, #tpu.memory_space<semaphore_mem>> -> memref<1x1x!tpu.dma_semaphore, #tpu.memory_space<semaphore_mem>>
    %62 = tpu.memref_squeeze %61 : memref<1x1x!tpu.dma_semaphore, #tpu.memory_space<semaphore_mem>> -> memref<!tpu.dma_semaphore, #tpu.memory_space<semaphore_mem>>
    tpu.enqueue_dma source(%58 : memref<1x128xf32, #tpu.memory_space<any>>) target(%60 : memref<1x128xf32, #tpu.memory_space<vmem>>) target_semaphore(%62 : memref<!tpu.dma_semaphore, #tpu.memory_space<semaphore_mem>>)
    %63 = arith.index_cast %arg0 : i32 to index
    %c7 = arith.constant 7 : index
    %64 = memref.load %arg1[%63, %c7] : memref<2x16xi32, #tpu.memory_space<smem>>
    %c0_i32_48 = arith.constant 0 : i32
    %65 = arith.maxsi %64, %c0_i32_48 : i32
    %c63_i32_49 = arith.constant 63 : i32
    %66 = arith.minsi %65, %c63_i32_49 : i32
    %c0_i32_50 = arith.constant 0 : i32
    %c0_i32_51 = arith.constant 0 : i32
    %c7_i32 = arith.constant 7 : i32
    %c0_i32_52 = arith.constant 0 : i32
    %67 = tpu.memref_slice %arg7[%66, %c0_i32_52] : memref<64x128xf32, #tpu.memory_space<any>> -> memref<1x128xf32, #tpu.memory_space<any>>
    %c7_i32_53 = arith.constant 7 : i32
    %c0_i32_54 = arith.constant 0 : i32
    %68 = tpu.memref_slice %arg9[%c0_i32_50, %c7_i32_53, %c0_i32_54] : memref<2x8x128xf32, #tpu.memory_space<vmem>> -> memref<1x1x128xf32, #tpu.memory_space<vmem>>
    %69 = tpu.memref_squeeze %68 : memref<1x1x128xf32, #tpu.memory_space<vmem>> -> memref<1x128xf32, #tpu.memory_space<vmem>>
    %70 = tpu.memref_slice %arg10[%c0_i32_51, %c7_i32] : memref<2x8x!tpu.dma_semaphore, #tpu.memory_space<semaphore_mem>> -> memref<1x1x!tpu.dma_semaphore, #tpu.memory_space<semaphore_mem>>
    %71 = tpu.memref_squeeze %70 : memref<1x1x!tpu.dma_semaphore, #tpu.memory_space<semaphore_mem>> -> memref<!tpu.dma_semaphore, #tpu.memory_space<semaphore_mem>>
    tpu.enqueue_dma source(%67 : memref<1x128xf32, #tpu.memory_space<any>>) target(%69 : memref<1x128xf32, #tpu.memory_space<vmem>>) target_semaphore(%71 : memref<!tpu.dma_semaphore, #tpu.memory_space<semaphore_mem>>)
    %c0_55 = arith.constant 0 : index
    %c0_56 = arith.constant 0 : index
    %c0_57 = arith.constant 0 : index
    %72 = vector.load %arg2[%c0_55, %c0_56, %c0_57] : memref<1x16x1xi32, #tpu.memory_space<vmem>>, vector<1x16x1xi32>
    %73 = vector.shape_cast %72 : vector<1x16x1xi32> to vector<16x1xi32>
    %c0_58 = arith.constant 0 : index
    %c0_59 = arith.constant 0 : index
    %74 = vector.load %arg3[%c0_58, %c0_59] : memref<16x128xf32, #tpu.memory_space<vmem>>, vector<16x128xf32>
    %c0_i32_60 = arith.constant 0 : i32
    %75 = vector.broadcast %c0_i32_60 : i32 to vector<16x1xi32>
    %76 = arith.cmpi eq, %73, %75 : vector<16x1xi32>
    %77 = arith.extui %76 : vector<16x1xi1> to vector<16x1xi32>
    %78 = arith.sitofp %77 : vector<16x1xi32> to vector<16x1xf32>
    %c0_61 = arith.constant 0 : index
    %c0_62 = arith.constant 0 : index
    %79 = vector.load %arg4[%c0_61, %c0_62] : memref<2x128xf32, #tpu.memory_space<vmem>>, vector<1x128xf32>
    %80 = vector.broadcast %78 : vector<16x1xf32> to vector<16x128xf32>
    %81 = vector.broadcast %79 : vector<1x128xf32> to vector<16x128xf32>
    %82 = arith.mulf %80, %81 : vector<16x128xf32>
    %83 = arith.addf %74, %82 : vector<16x128xf32>
    %c1_i32_63 = arith.constant 1 : i32
    %84 = vector.broadcast %c1_i32_63 : i32 to vector<16x1xi32>
    %85 = arith.cmpi eq, %73, %84 : vector<16x1xi32>
    %86 = arith.extui %85 : vector<16x1xi1> to vector<16x1xi32>
    %87 = arith.sitofp %86 : vector<16x1xi32> to vector<16x1xf32>
    %c1_64 = arith.constant 1 : index
    %c0_65 = arith.constant 0 : index
    %88 = vector.load %arg4[%c1_64, %c0_65] : memref<2x128xf32, #tpu.memory_space<vmem>>, vector<1x128xf32>
    %89 = vector.broadcast %87 : vector<16x1xf32> to vector<16x128xf32>
    %90 = vector.broadcast %88 : vector<1x128xf32> to vector<16x128xf32>
    %91 = arith.mulf %89, %90 : vector<16x128xf32>
    %92 = arith.addf %83, %91 : vector<16x128xf32>
    %c0_66 = arith.constant 0 : index
    %c0_67 = arith.constant 0 : index
    %93 = vector.load %arg11[%c0_66, %c0_67] : memref<16x128xf32, #tpu.memory_space<vmem>>, vector<16x128xf32>
    tpu.vector_store %arg11[%c0_66, %c0_67], %92 {strides = array<i32>} : memref<16x128xf32, #tpu.memory_space<vmem>>, vector<16x128xf32>,
    %c0_68 = arith.constant 0 : index
    %c0_69 = arith.constant 0 : index
    %94 = vector.load %arg5[%c0_68, %c0_69] : memref<1x128xf32, #tpu.memory_space<vmem>>, vector<1x128xf32>
    %c0_70 = arith.constant 0 : index
    %c0_71 = arith.constant 0 : index
    %95 = vector.load %arg6[%c0_70, %c0_71] : memref<1x128xf32, #tpu.memory_space<vmem>>, vector<1x128xf32>
    %c0_i32_72 = arith.constant 0 : i32
    %c2_i32_73 = arith.constant 2 : i32
    %96 = arith.addi %c0_i32_72, %c2_i32_73 : i32
    %c1_i32_74 = arith.constant 1 : i32
    scf.for %arg12 = %c0_i32_72 to %96 step %c1_i32_74  : i32 {
      %c2_i32_76 = arith.constant 2 : i32
      %97 = arith.remsi %arg12, %c2_i32_76 : i32
      %c0_i32_77 = arith.constant 0 : i32
      %c0_i32_78 = arith.constant 0 : i32
      %c0_i32_79 = arith.constant 0 : i32
      %98 = tpu.memref_slice %arg7[%c0_i32_78, %c0_i32_79] : memref<64x128xf32, #tpu.memory_space<any>> -> memref<1x128xf32, #tpu.memory_space<any>>
      %c0_i32_80 = arith.constant 0 : i32
      %c0_i32_81 = arith.constant 0 : i32
      %99 = tpu.memref_slice %arg9[%97, %c0_i32_80, %c0_i32_81] : memref<2x8x128xf32, #tpu.memory_space<vmem>> -> memref<1x1x128xf32, #tpu.memory_space<vmem>>
      %100 = tpu.memref_squeeze %99 : memref<1x1x128xf32, #tpu.memory_space<vmem>> -> memref<1x128xf32, #tpu.memory_space<vmem>>
      %101 = tpu.memref_slice %arg10[%97, %c0_i32_77] : memref<2x8x!tpu.dma_semaphore, #tpu.memory_space<semaphore_mem>> -> memref<1x1x!tpu.dma_semaphore, #tpu.memory_space<semaphore_mem>>
      %102 = tpu.memref_squeeze %101 : memref<1x1x!tpu.dma_semaphore, #tpu.memory_space<semaphore_mem>> -> memref<!tpu.dma_semaphore, #tpu.memory_space<semaphore_mem>>
      tpu.wait_dma2 semaphore(%102 : memref<!tpu.dma_semaphore, #tpu.memory_space<semaphore_mem>>) src(%98 : memref<1x128xf32, #tpu.memory_space<any>>) dst(%100 : memref<1x128xf32, #tpu.memory_space<vmem>>)
      %c1_i32_82 = arith.constant 1 : i32
      %c0_i32_83 = arith.constant 0 : i32
      %c0_i32_84 = arith.constant 0 : i32
      %103 = tpu.memref_slice %arg7[%c0_i32_83, %c0_i32_84] : memref<64x128xf32, #tpu.memory_space<any>> -> memref<1x128xf32, #tpu.memory_space<any>>
      %c1_i32_85 = arith.constant 1 : i32
      %c0_i32_86 = arith.constant 0 : i32
      %104 = tpu.memref_slice %arg9[%97, %c1_i32_85, %c0_i32_86] : memref<2x8x128xf32, #tpu.memory_space<vmem>> -> memref<1x1x128xf32, #tpu.memory_space<vmem>>
      %105 = tpu.memref_squeeze %104 : memref<1x1x128xf32, #tpu.memory_space<vmem>> -> memref<1x128xf32, #tpu.memory_space<vmem>>
      %106 = tpu.memref_slice %arg10[%97, %c1_i32_82] : memref<2x8x!tpu.dma_semaphore, #tpu.memory_space<semaphore_mem>> -> memref<1x1x!tpu.dma_semaphore, #tpu.memory_space<semaphore_mem>>
      %107 = tpu.memref_squeeze %106 : memref<1x1x!tpu.dma_semaphore, #tpu.memory_space<semaphore_mem>> -> memref<!tpu.dma_semaphore, #tpu.memory_space<semaphore_mem>>
      tpu.wait_dma2 semaphore(%107 : memref<!tpu.dma_semaphore, #tpu.memory_space<semaphore_mem>>) src(%103 : memref<1x128xf32, #tpu.memory_space<any>>) dst(%105 : memref<1x128xf32, #tpu.memory_space<vmem>>)
      %c2_i32_87 = arith.constant 2 : i32
      %c0_i32_88 = arith.constant 0 : i32
      %c0_i32_89 = arith.constant 0 : i32
      %108 = tpu.memref_slice %arg7[%c0_i32_88, %c0_i32_89] : memref<64x128xf32, #tpu.memory_space<any>> -> memref<1x128xf32, #tpu.memory_space<any>>
      %c2_i32_90 = arith.constant 2 : i32
      %c0_i32_91 = arith.constant 0 : i32
      %109 = tpu.memref_slice %arg9[%97, %c2_i32_90, %c0_i32_91] : memref<2x8x128xf32, #tpu.memory_space<vmem>> -> memref<1x1x128xf32, #tpu.memory_space<vmem>>
      %110 = tpu.memref_squeeze %109 : memref<1x1x128xf32, #tpu.memory_space<vmem>> -> memref<1x128xf32, #tpu.memory_space<vmem>>
      %111 = tpu.memref_slice %arg10[%97, %c2_i32_87] : memref<2x8x!tpu.dma_semaphore, #tpu.memory_space<semaphore_mem>> -> memref<1x1x!tpu.dma_semaphore, #tpu.memory_space<semaphore_mem>>
      %112 = tpu.memref_squeeze %111 : memref<1x1x!tpu.dma_semaphore, #tpu.memory_space<semaphore_mem>> -> memref<!tpu.dma_semaphore, #tpu.memory_space<semaphore_mem>>
      tpu.wait_dma2 semaphore(%112 : memref<!tpu.dma_semaphore, #tpu.memory_space<semaphore_mem>>) src(%108 : memref<1x128xf32, #tpu.memory_space<any>>) dst(%110 : memref<1x128xf32, #tpu.memory_space<vmem>>)
      %c3_i32_92 = arith.constant 3 : i32
      %c0_i32_93 = arith.constant 0 : i32
      %c0_i32_94 = arith.constant 0 : i32
      %113 = tpu.memref_slice %arg7[%c0_i32_93, %c0_i32_94] : memref<64x128xf32, #tpu.memory_space<any>> -> memref<1x128xf32, #tpu.memory_space<any>>
      %c3_i32_95 = arith.constant 3 : i32
      %c0_i32_96 = arith.constant 0 : i32
      %114 = tpu.memref_slice %arg9[%97, %c3_i32_95, %c0_i32_96] : memref<2x8x128xf32, #tpu.memory_space<vmem>> -> memref<1x1x128xf32, #tpu.memory_space<vmem>>
      %115 = tpu.memref_squeeze %114 : memref<1x1x128xf32, #tpu.memory_space<vmem>> -> memref<1x128xf32, #tpu.memory_space<vmem>>
      %116 = tpu.memref_slice %arg10[%97, %c3_i32_92] : memref<2x8x!tpu.dma_semaphore, #tpu.memory_space<semaphore_mem>> -> memref<1x1x!tpu.dma_semaphore, #tpu.memory_space<semaphore_mem>>
      %117 = tpu.memref_squeeze %116 : memref<1x1x!tpu.dma_semaphore, #tpu.memory_space<semaphore_mem>> -> memref<!tpu.dma_semaphore, #tpu.memory_space<semaphore_mem>>
      tpu.wait_dma2 semaphore(%117 : memref<!tpu.dma_semaphore, #tpu.memory_space<semaphore_mem>>) src(%113 : memref<1x128xf32, #tpu.memory_space<any>>) dst(%115 : memref<1x128xf32, #tpu.memory_space<vmem>>)
      %c4_i32_97 = arith.constant 4 : i32
      %c0_i32_98 = arith.constant 0 : i32
      %c0_i32_99 = arith.constant 0 : i32
      %118 = tpu.memref_slice %arg7[%c0_i32_98, %c0_i32_99] : memref<64x128xf32, #tpu.memory_space<any>> -> memref<1x128xf32, #tpu.memory_space<any>>
      %c4_i32_100 = arith.constant 4 : i32
      %c0_i32_101 = arith.constant 0 : i32
      %119 = tpu.memref_slice %arg9[%97, %c4_i32_100, %c0_i32_101] : memref<2x8x128xf32, #tpu.memory_space<vmem>> -> memref<1x1x128xf32, #tpu.memory_space<vmem>>
      %120 = tpu.memref_squeeze %119 : memref<1x1x128xf32, #tpu.memory_space<vmem>> -> memref<1x128xf32, #tpu.memory_space<vmem>>
      %121 = tpu.memref_slice %arg10[%97, %c4_i32_97] : memref<2x8x!tpu.dma_semaphore, #tpu.memory_space<semaphore_mem>> -> memref<1x1x!tpu.dma_semaphore, #tpu.memory_space<semaphore_mem>>
      %122 = tpu.memref_squeeze %121 : memref<1x1x!tpu.dma_semaphore, #tpu.memory_space<semaphore_mem>> -> memref<!tpu.dma_semaphore, #tpu.memory_space<semaphore_mem>>
      tpu.wait_dma2 semaphore(%122 : memref<!tpu.dma_semaphore, #tpu.memory_space<semaphore_mem>>) src(%118 : memref<1x128xf32, #tpu.memory_space<any>>) dst(%120 : memref<1x128xf32, #tpu.memory_space<vmem>>)
      %c5_i32_102 = arith.constant 5 : i32
      %c0_i32_103 = arith.constant 0 : i32
      %c0_i32_104 = arith.constant 0 : i32
      %123 = tpu.memref_slice %arg7[%c0_i32_103, %c0_i32_104] : memref<64x128xf32, #tpu.memory_space<any>> -> memref<1x128xf32, #tpu.memory_space<any>>
      %c5_i32_105 = arith.constant 5 : i32
      %c0_i32_106 = arith.constant 0 : i32
      %124 = tpu.memref_slice %arg9[%97, %c5_i32_105, %c0_i32_106] : memref<2x8x128xf32, #tpu.memory_space<vmem>> -> memref<1x1x128xf32, #tpu.memory_space<vmem>>
      %125 = tpu.memref_squeeze %124 : memref<1x1x128xf32, #tpu.memory_space<vmem>> -> memref<1x128xf32, #tpu.memory_space<vmem>>
      %126 = tpu.memref_slice %arg10[%97, %c5_i32_102] : memref<2x8x!tpu.dma_semaphore, #tpu.memory_space<semaphore_mem>> -> memref<1x1x!tpu.dma_semaphore, #tpu.memory_space<semaphore_mem>>
      %127 = tpu.memref_squeeze %126 : memref<1x1x!tpu.dma_semaphore, #tpu.memory_space<semaphore_mem>> -> memref<!tpu.dma_semaphore, #tpu.memory_space<semaphore_mem>>
      tpu.wait_dma2 semaphore(%127 : memref<!tpu.dma_semaphore, #tpu.memory_space<semaphore_mem>>) src(%123 : memref<1x128xf32, #tpu.memory_space<any>>) dst(%125 : memref<1x128xf32, #tpu.memory_space<vmem>>)
      %c6_i32_107 = arith.constant 6 : i32
      %c0_i32_108 = arith.constant 0 : i32
      %c0_i32_109 = arith.constant 0 : i32
      %128 = tpu.memref_slice %arg7[%c0_i32_108, %c0_i32_109] : memref<64x128xf32, #tpu.memory_space<any>> -> memref<1x128xf32, #tpu.memory_space<any>>
      %c6_i32_110 = arith.constant 6 : i32
      %c0_i32_111 = arith.constant 0 : i32
      %129 = tpu.memref_slice %arg9[%97, %c6_i32_110, %c0_i32_111] : memref<2x8x128xf32, #tpu.memory_space<vmem>> -> memref<1x1x128xf32, #tpu.memory_space<vmem>>
      %130 = tpu.memref_squeeze %129 : memref<1x1x128xf32, #tpu.memory_space<vmem>> -> memref<1x128xf32, #tpu.memory_space<vmem>>
      %131 = tpu.memref_slice %arg10[%97, %c6_i32_107] : memref<2x8x!tpu.dma_semaphore, #tpu.memory_space<semaphore_mem>> -> memref<1x1x!tpu.dma_semaphore, #tpu.memory_space<semaphore_mem>>
      %132 = tpu.memref_squeeze %131 : memref<1x1x!tpu.dma_semaphore, #tpu.memory_space<semaphore_mem>> -> memref<!tpu.dma_semaphore, #tpu.memory_space<semaphore_mem>>
      tpu.wait_dma2 semaphore(%132 : memref<!tpu.dma_semaphore, #tpu.memory_space<semaphore_mem>>) src(%128 : memref<1x128xf32, #tpu.memory_space<any>>) dst(%130 : memref<1x128xf32, #tpu.memory_space<vmem>>)
      %c7_i32_112 = arith.constant 7 : i32
      %c0_i32_113 = arith.constant 0 : i32
      %c0_i32_114 = arith.constant 0 : i32
      %133 = tpu.memref_slice %arg7[%c0_i32_113, %c0_i32_114] : memref<64x128xf32, #tpu.memory_space<any>> -> memref<1x128xf32, #tpu.memory_space<any>>
      %c7_i32_115 = arith.constant 7 : i32
      %c0_i32_116 = arith.constant 0 : i32
      %134 = tpu.memref_slice %arg9[%97, %c7_i32_115, %c0_i32_116] : memref<2x8x128xf32, #tpu.memory_space<vmem>> -> memref<1x1x128xf32, #tpu.memory_space<vmem>>
      %135 = tpu.memref_squeeze %134 : memref<1x1x128xf32, #tpu.memory_space<vmem>> -> memref<1x128xf32, #tpu.memory_space<vmem>>
      %136 = tpu.memref_slice %arg10[%97, %c7_i32_112] : memref<2x8x!tpu.dma_semaphore, #tpu.memory_space<semaphore_mem>> -> memref<1x1x!tpu.dma_semaphore, #tpu.memory_space<semaphore_mem>>
      %137 = tpu.memref_squeeze %136 : memref<1x1x!tpu.dma_semaphore, #tpu.memory_space<semaphore_mem>> -> memref<!tpu.dma_semaphore, #tpu.memory_space<semaphore_mem>>
      tpu.wait_dma2 semaphore(%137 : memref<!tpu.dma_semaphore, #tpu.memory_space<semaphore_mem>>) src(%133 : memref<1x128xf32, #tpu.memory_space<any>>) dst(%135 : memref<1x128xf32, #tpu.memory_space<vmem>>)
      %c1_i32_117 = arith.constant 1 : i32
      %138 = arith.addi %arg12, %c1_i32_117 : i32
      %c2_i32_118 = arith.constant 2 : i32
      %139 = arith.cmpi slt, %138, %c2_i32_118 : i32
      %140 = arith.extui %139 : i1 to i32
      %c0_i32_119 = arith.constant 0 : i32
      %141 = arith.cmpi ne, %140, %c0_i32_119 : i32
      scf.if %141 {
        %c1_i32_129 = arith.constant 1 : i32
        %176 = arith.addi %arg12, %c1_i32_129 : i32
        %c1_i32_130 = arith.constant 1 : i32
        %177 = arith.subi %c1_i32_130, %97 : i32
        %c8_i32_131 = arith.constant 8 : i32
        %178 = arith.muli %176, %c8_i32_131 : i32
        %c0_i32_132 = arith.constant 0 : i32
        %179 = arith.addi %178, %c0_i32_132 : i32
        %180 = arith.index_cast %arg0 : i32 to index
        %181 = arith.index_cast %179 : i32 to index
        %182 = memref.load %arg1[%180, %181] : memref<2x16xi32, #tpu.memory_space<smem>>
        %c0_i32_133 = arith.constant 0 : i32
        %183 = arith.maxsi %182, %c0_i32_133 : i32
        %c63_i32_134 = arith.constant 63 : i32
        %184 = arith.minsi %183, %c63_i32_134 : i32
        %c0_i32_135 = arith.constant 0 : i32
        %c0_i32_136 = arith.constant 0 : i32
        %185 = tpu.memref_slice %arg7[%184, %c0_i32_136] : memref<64x128xf32, #tpu.memory_space<any>> -> memref<1x128xf32, #tpu.memory_space<any>>
        %c0_i32_137 = arith.constant 0 : i32
        %c0_i32_138 = arith.constant 0 : i32
        %186 = tpu.memref_slice %arg9[%177, %c0_i32_137, %c0_i32_138] : memref<2x8x128xf32, #tpu.memory_space<vmem>> -> memref<1x1x128xf32, #tpu.memory_space<vmem>>
        %187 = tpu.memref_squeeze %186 : memref<1x1x128xf32, #tpu.memory_space<vmem>> -> memref<1x128xf32, #tpu.memory_space<vmem>>
        %188 = tpu.memref_slice %arg10[%177, %c0_i32_135] : memref<2x8x!tpu.dma_semaphore, #tpu.memory_space<semaphore_mem>> -> memref<1x1x!tpu.dma_semaphore, #tpu.memory_space<semaphore_mem>>
        %189 = tpu.memref_squeeze %188 : memref<1x1x!tpu.dma_semaphore, #tpu.memory_space<semaphore_mem>> -> memref<!tpu.dma_semaphore, #tpu.memory_space<semaphore_mem>>
        tpu.enqueue_dma source(%185 : memref<1x128xf32, #tpu.memory_space<any>>) target(%187 : memref<1x128xf32, #tpu.memory_space<vmem>>) target_semaphore(%189 : memref<!tpu.dma_semaphore, #tpu.memory_space<semaphore_mem>>)
        %c1_i32_139 = arith.constant 1 : i32
        %190 = arith.addi %178, %c1_i32_139 : i32
        %191 = arith.index_cast %arg0 : i32 to index
        %192 = arith.index_cast %190 : i32 to index
        %193 = memref.load %arg1[%191, %192] : memref<2x16xi32, #tpu.memory_space<smem>>
        %c0_i32_140 = arith.constant 0 : i32
        %194 = arith.maxsi %193, %c0_i32_140 : i32
        %c63_i32_141 = arith.constant 63 : i32
        %195 = arith.minsi %194, %c63_i32_141 : i32
        %c1_i32_142 = arith.constant 1 : i32
        %c0_i32_143 = arith.constant 0 : i32
        %196 = tpu.memref_slice %arg7[%195, %c0_i32_143] : memref<64x128xf32, #tpu.memory_space<any>> -> memref<1x128xf32, #tpu.memory_space<any>>
        %c1_i32_144 = arith.constant 1 : i32
        %c0_i32_145 = arith.constant 0 : i32
        %197 = tpu.memref_slice %arg9[%177, %c1_i32_144, %c0_i32_145] : memref<2x8x128xf32, #tpu.memory_space<vmem>> -> memref<1x1x128xf32, #tpu.memory_space<vmem>>
        %198 = tpu.memref_squeeze %197 : memref<1x1x128xf32, #tpu.memory_space<vmem>> -> memref<1x128xf32, #tpu.memory_space<vmem>>
        %199 = tpu.memref_slice %arg10[%177, %c1_i32_142] : memref<2x8x!tpu.dma_semaphore, #tpu.memory_space<semaphore_mem>> -> memref<1x1x!tpu.dma_semaphore, #tpu.memory_space<semaphore_mem>>
        %200 = tpu.memref_squeeze %199 : memref<1x1x!tpu.dma_semaphore, #tpu.memory_space<semaphore_mem>> -> memref<!tpu.dma_semaphore, #tpu.memory_space<semaphore_mem>>
        tpu.enqueue_dma source(%196 : memref<1x128xf32, #tpu.memory_space<any>>) target(%198 : memref<1x128xf32, #tpu.memory_space<vmem>>) target_semaphore(%200 : memref<!tpu.dma_semaphore, #tpu.memory_space<semaphore_mem>>)
        %c2_i32_146 = arith.constant 2 : i32
        %201 = arith.addi %178, %c2_i32_146 : i32
        %202 = arith.index_cast %arg0 : i32 to index
        %203 = arith.index_cast %201 : i32 to index
        %204 = memref.load %arg1[%202, %203] : memref<2x16xi32, #tpu.memory_space<smem>>
        %c0_i32_147 = arith.constant 0 : i32
        %205 = arith.maxsi %204, %c0_i32_147 : i32
        %c63_i32_148 = arith.constant 63 : i32
        %206 = arith.minsi %205, %c63_i32_148 : i32
        %c2_i32_149 = arith.constant 2 : i32
        %c0_i32_150 = arith.constant 0 : i32
        %207 = tpu.memref_slice %arg7[%206, %c0_i32_150] : memref<64x128xf32, #tpu.memory_space<any>> -> memref<1x128xf32, #tpu.memory_space<any>>
        %c2_i32_151 = arith.constant 2 : i32
        %c0_i32_152 = arith.constant 0 : i32
        %208 = tpu.memref_slice %arg9[%177, %c2_i32_151, %c0_i32_152] : memref<2x8x128xf32, #tpu.memory_space<vmem>> -> memref<1x1x128xf32, #tpu.memory_space<vmem>>
        %209 = tpu.memref_squeeze %208 : memref<1x1x128xf32, #tpu.memory_space<vmem>> -> memref<1x128xf32, #tpu.memory_space<vmem>>
        %210 = tpu.memref_slice %arg10[%177, %c2_i32_149] : memref<2x8x!tpu.dma_semaphore, #tpu.memory_space<semaphore_mem>> -> memref<1x1x!tpu.dma_semaphore, #tpu.memory_space<semaphore_mem>>
        %211 = tpu.memref_squeeze %210 : memref<1x1x!tpu.dma_semaphore, #tpu.memory_space<semaphore_mem>> -> memref<!tpu.dma_semaphore, #tpu.memory_space<semaphore_mem>>
        tpu.enqueue_dma source(%207 : memref<1x128xf32, #tpu.memory_space<any>>) target(%209 : memref<1x128xf32, #tpu.memory_space<vmem>>) target_semaphore(%211 : memref<!tpu.dma_semaphore, #tpu.memory_space<semaphore_mem>>)
        %c3_i32_153 = arith.constant 3 : i32
        %212 = arith.addi %178, %c3_i32_153 : i32
        %213 = arith.index_cast %arg0 : i32 to index
        %214 = arith.index_cast %212 : i32 to index
        %215 = memref.load %arg1[%213, %214] : memref<2x16xi32, #tpu.memory_space<smem>>
        %c0_i32_154 = arith.constant 0 : i32
        %216 = arith.maxsi %215, %c0_i32_154 : i32
        %c63_i32_155 = arith.constant 63 : i32
        %217 = arith.minsi %216, %c63_i32_155 : i32
        %c3_i32_156 = arith.constant 3 : i32
        %c0_i32_157 = arith.constant 0 : i32
        %218 = tpu.memref_slice %arg7[%217, %c0_i32_157] : memref<64x128xf32, #tpu.memory_space<any>> -> memref<1x128xf32, #tpu.memory_space<any>>
        %c3_i32_158 = arith.constant 3 : i32
        %c0_i32_159 = arith.constant 0 : i32
        %219 = tpu.memref_slice %arg9[%177, %c3_i32_158, %c0_i32_159] : memref<2x8x128xf32, #tpu.memory_space<vmem>> -> memref<1x1x128xf32, #tpu.memory_space<vmem>>
        %220 = tpu.memref_squeeze %219 : memref<1x1x128xf32, #tpu.memory_space<vmem>> -> memref<1x128xf32, #tpu.memory_space<vmem>>
        %221 = tpu.memref_slice %arg10[%177, %c3_i32_156] : memref<2x8x!tpu.dma_semaphore, #tpu.memory_space<semaphore_mem>> -> memref<1x1x!tpu.dma_semaphore, #tpu.memory_space<semaphore_mem>>
        %222 = tpu.memref_squeeze %221 : memref<1x1x!tpu.dma_semaphore, #tpu.memory_space<semaphore_mem>> -> memref<!tpu.dma_semaphore, #tpu.memory_space<semaphore_mem>>
        tpu.enqueue_dma source(%218 : memref<1x128xf32, #tpu.memory_space<any>>) target(%220 : memref<1x128xf32, #tpu.memory_space<vmem>>) target_semaphore(%222 : memref<!tpu.dma_semaphore, #tpu.memory_space<semaphore_mem>>)
        %c4_i32_160 = arith.constant 4 : i32
        %223 = arith.addi %178, %c4_i32_160 : i32
        %224 = arith.index_cast %arg0 : i32 to index
        %225 = arith.index_cast %223 : i32 to index
        %226 = memref.load %arg1[%224, %225] : memref<2x16xi32, #tpu.memory_space<smem>>
        %c0_i32_161 = arith.constant 0 : i32
        %227 = arith.maxsi %226, %c0_i32_161 : i32
        %c63_i32_162 = arith.constant 63 : i32
        %228 = arith.minsi %227, %c63_i32_162 : i32
        %c4_i32_163 = arith.constant 4 : i32
        %c0_i32_164 = arith.constant 0 : i32
        %229 = tpu.memref_slice %arg7[%228, %c0_i32_164] : memref<64x128xf32, #tpu.memory_space<any>> -> memref<1x128xf32, #tpu.memory_space<any>>
        %c4_i32_165 = arith.constant 4 : i32
        %c0_i32_166 = arith.constant 0 : i32
        %230 = tpu.memref_slice %arg9[%177, %c4_i32_165, %c0_i32_166] : memref<2x8x128xf32, #tpu.memory_space<vmem>> -> memref<1x1x128xf32, #tpu.memory_space<vmem>>
        %231 = tpu.memref_squeeze %230 : memref<1x1x128xf32, #tpu.memory_space<vmem>> -> memref<1x128xf32, #tpu.memory_space<vmem>>
        %232 = tpu.memref_slice %arg10[%177, %c4_i32_163] : memref<2x8x!tpu.dma_semaphore, #tpu.memory_space<semaphore_mem>> -> memref<1x1x!tpu.dma_semaphore, #tpu.memory_space<semaphore_mem>>
        %233 = tpu.memref_squeeze %232 : memref<1x1x!tpu.dma_semaphore, #tpu.memory_space<semaphore_mem>> -> memref<!tpu.dma_semaphore, #tpu.memory_space<semaphore_mem>>
        tpu.enqueue_dma source(%229 : memref<1x128xf32, #tpu.memory_space<any>>) target(%231 : memref<1x128xf32, #tpu.memory_space<vmem>>) target_semaphore(%233 : memref<!tpu.dma_semaphore, #tpu.memory_space<semaphore_mem>>)
        %c5_i32_167 = arith.constant 5 : i32
        %234 = arith.addi %178, %c5_i32_167 : i32
        %235 = arith.index_cast %arg0 : i32 to index
        %236 = arith.index_cast %234 : i32 to index
        %237 = memref.load %arg1[%235, %236] : memref<2x16xi32, #tpu.memory_space<smem>>
        %c0_i32_168 = arith.constant 0 : i32
        %238 = arith.maxsi %237, %c0_i32_168 : i32
        %c63_i32_169 = arith.constant 63 : i32
        %239 = arith.minsi %238, %c63_i32_169 : i32
        %c5_i32_170 = arith.constant 5 : i32
        %c0_i32_171 = arith.constant 0 : i32
        %240 = tpu.memref_slice %arg7[%239, %c0_i32_171] : memref<64x128xf32, #tpu.memory_space<any>> -> memref<1x128xf32, #tpu.memory_space<any>>
        %c5_i32_172 = arith.constant 5 : i32
        %c0_i32_173 = arith.constant 0 : i32
        %241 = tpu.memref_slice %arg9[%177, %c5_i32_172, %c0_i32_173] : memref<2x8x128xf32, #tpu.memory_space<vmem>> -> memref<1x1x128xf32, #tpu.memory_space<vmem>>
        %242 = tpu.memref_squeeze %241 : memref<1x1x128xf32, #tpu.memory_space<vmem>> -> memref<1x128xf32, #tpu.memory_space<vmem>>
        %243 = tpu.memref_slice %arg10[%177, %c5_i32_170] : memref<2x8x!tpu.dma_semaphore, #tpu.memory_space<semaphore_mem>> -> memref<1x1x!tpu.dma_semaphore, #tpu.memory_space<semaphore_mem>>
        %244 = tpu.memref_squeeze %243 : memref<1x1x!tpu.dma_semaphore, #tpu.memory_space<semaphore_mem>> -> memref<!tpu.dma_semaphore, #tpu.memory_space<semaphore_mem>>
        tpu.enqueue_dma source(%240 : memref<1x128xf32, #tpu.memory_space<any>>) target(%242 : memref<1x128xf32, #tpu.memory_space<vmem>>) target_semaphore(%244 : memref<!tpu.dma_semaphore, #tpu.memory_space<semaphore_mem>>)
        %c6_i32_174 = arith.constant 6 : i32
        %245 = arith.addi %178, %c6_i32_174 : i32
        %246 = arith.index_cast %arg0 : i32 to index
        %247 = arith.index_cast %245 : i32 to index
        %248 = memref.load %arg1[%246, %247] : memref<2x16xi32, #tpu.memory_space<smem>>
        %c0_i32_175 = arith.constant 0 : i32
        %249 = arith.maxsi %248, %c0_i32_175 : i32
        %c63_i32_176 = arith.constant 63 : i32
        %250 = arith.minsi %249, %c63_i32_176 : i32
        %c6_i32_177 = arith.constant 6 : i32
        %c0_i32_178 = arith.constant 0 : i32
        %251 = tpu.memref_slice %arg7[%250, %c0_i32_178] : memref<64x128xf32, #tpu.memory_space<any>> -> memref<1x128xf32, #tpu.memory_space<any>>
        %c6_i32_179 = arith.constant 6 : i32
        %c0_i32_180 = arith.constant 0 : i32
        %252 = tpu.memref_slice %arg9[%177, %c6_i32_179, %c0_i32_180] : memref<2x8x128xf32, #tpu.memory_space<vmem>> -> memref<1x1x128xf32, #tpu.memory_space<vmem>>
        %253 = tpu.memref_squeeze %252 : memref<1x1x128xf32, #tpu.memory_space<vmem>> -> memref<1x128xf32, #tpu.memory_space<vmem>>
        %254 = tpu.memref_slice %arg10[%177, %c6_i32_177] : memref<2x8x!tpu.dma_semaphore, #tpu.memory_space<semaphore_mem>> -> memref<1x1x!tpu.dma_semaphore, #tpu.memory_space<semaphore_mem>>
        %255 = tpu.memref_squeeze %254 : memref<1x1x!tpu.dma_semaphore, #tpu.memory_space<semaphore_mem>> -> memref<!tpu.dma_semaphore, #tpu.memory_space<semaphore_mem>>
        tpu.enqueue_dma source(%251 : memref<1x128xf32, #tpu.memory_space<any>>) target(%253 : memref<1x128xf32, #tpu.memory_space<vmem>>) target_semaphore(%255 : memref<!tpu.dma_semaphore, #tpu.memory_space<semaphore_mem>>)
        %c7_i32_181 = arith.constant 7 : i32
        %256 = arith.addi %178, %c7_i32_181 : i32
        %257 = arith.index_cast %arg0 : i32 to index
        %258 = arith.index_cast %256 : i32 to index
        %259 = memref.load %arg1[%257, %258] : memref<2x16xi32, #tpu.memory_space<smem>>
        %c0_i32_182 = arith.constant 0 : i32
        %260 = arith.maxsi %259, %c0_i32_182 : i32
        %c63_i32_183 = arith.constant 63 : i32
        %261 = arith.minsi %260, %c63_i32_183 : i32
        %c7_i32_184 = arith.constant 7 : i32
        %c0_i32_185 = arith.constant 0 : i32
        %262 = tpu.memref_slice %arg7[%261, %c0_i32_185] : memref<64x128xf32, #tpu.memory_space<any>> -> memref<1x128xf32, #tpu.memory_space<any>>
        %c7_i32_186 = arith.constant 7 : i32
        %c0_i32_187 = arith.constant 0 : i32
        %263 = tpu.memref_slice %arg9[%177, %c7_i32_186, %c0_i32_187] : memref<2x8x128xf32, #tpu.memory_space<vmem>> -> memref<1x1x128xf32, #tpu.memory_space<vmem>>
        %264 = tpu.memref_squeeze %263 : memref<1x1x128xf32, #tpu.memory_space<vmem>> -> memref<1x128xf32, #tpu.memory_space<vmem>>
        %265 = tpu.memref_slice %arg10[%177, %c7_i32_184] : memref<2x8x!tpu.dma_semaphore, #tpu.memory_space<semaphore_mem>> -> memref<1x1x!tpu.dma_semaphore, #tpu.memory_space<semaphore_mem>>
        %266 = tpu.memref_squeeze %265 : memref<1x1x!tpu.dma_semaphore, #tpu.memory_space<semaphore_mem>> -> memref<!tpu.dma_semaphore, #tpu.memory_space<semaphore_mem>>
        tpu.enqueue_dma source(%262 : memref<1x128xf32, #tpu.memory_space<any>>) target(%264 : memref<1x128xf32, #tpu.memory_space<vmem>>) target_semaphore(%266 : memref<!tpu.dma_semaphore, #tpu.memory_space<semaphore_mem>>)
      } else {
      }
      %c8_i32 = arith.constant 8 : i32
      %142 = arith.muli %arg12, %c8_i32 : i32
      %143 = tpu.assume_multiple %142, 8 : i32
      %144 = arith.index_cast %97 : i32 to index
      %c0_120 = arith.constant 0 : index
      %c0_121 = arith.constant 0 : index
      %145 = vector.load %arg9[%144, %c0_120, %c0_121] : memref<2x8x128xf32, #tpu.memory_space<vmem>>, vector<1x8x128xf32>
      %146 = vector.shape_cast %145 : vector<1x8x128xf32> to vector<8x128xf32>
      %147 = arith.index_cast %143 : i32 to index
      %c0_122 = arith.constant 0 : index
      %148 = vector.load %arg11[%147, %c0_122] : memref<16x128xf32, #tpu.memory_space<vmem>>, vector<8x128xf32>
      %149 = arith.addf %146, %148 : vector<8x128xf32>
      %cst = arith.constant dense<0.000000e+00> : vector<8xf32>
      %150 = vector.multi_reduction <add>, %149, %cst [1] : vector<8x128xf32> to vector<8xf32>
      %151 = vector.shape_cast %150 : vector<8xf32> to vector<8x1xf32>
      %cst_123 = arith.constant 1.280000e+02 : f32
      %152 = vector.broadcast %cst_123 : f32 to vector<8x1xf32>
      %153 = arith.divf %151, %152 : vector<8x1xf32>
      %154 = vector.broadcast %153 : vector<8x1xf32> to vector<8x128xf32>
      %155 = arith.subf %149, %154 : vector<8x128xf32>
      %156 = arith.mulf %155, %155 : vector<8x128xf32>
      %cst_124 = arith.constant dense<0.000000e+00> : vector<8xf32>
      %157 = vector.multi_reduction <add>, %156, %cst_124 [1] : vector<8x128xf32> to vector<8xf32>
      %158 = vector.shape_cast %157 : vector<8xf32> to vector<8x1xf32>
      %cst_125 = arith.constant 1.280000e+02 : f32
      %159 = vector.broadcast %cst_125 : f32 to vector<8x1xf32>
      %160 = arith.divf %158, %159 : vector<8x1xf32>
      %161 = vector.broadcast %153 : vector<8x1xf32> to vector<8x128xf32>
      %162 = arith.subf %149, %161 : vector<8x128xf32>
      %cst_126 = arith.constant 9.99999996E-13 : f32
      %163 = vector.broadcast %cst_126 : f32 to vector<8x1xf32>
      %164 = arith.addf %160, %163 : vector<8x1xf32>
      %165 = math.rsqrt %164 : vector<8x1xf32>
      %166 = vector.broadcast %165 : vector<8x1xf32> to vector<8x128xf32>
      %167 = arith.mulf %162, %166 : vector<8x128xf32>
      %168 = vector.broadcast %94 : vector<1x128xf32> to vector<8x128xf32>
      %169 = arith.mulf %167, %168 : vector<8x128xf32>
      %170 = vector.broadcast %95 : vector<1x128xf32> to vector<8x128xf32>
      %171 = arith.addf %169, %170 : vector<8x128xf32>
      %c0_127 = arith.constant 0 : index
      %172 = arith.index_cast %143 : i32 to index
      %c0_128 = arith.constant 0 : index
      %173 = vector.load %arg8[%c0_127, %172, %c0_128] : memref<1x16x128xf32, #tpu.memory_space<vmem>>, vector<1x8x128xf32>
      %174 = vector.shape_cast %173 : vector<1x8x128xf32> to vector<8x128xf32>
      %175 = vector.shape_cast %171 : vector<8x128xf32> to vector<1x8x128xf32>
      tpu.vector_store %arg8[%c0_127, %172, %c0_128], %175 {strides = array<i32>} : memref<1x16x128xf32, #tpu.memory_space<vmem>>, vector<1x8x128xf32>,
    }
    %c2_i32_75 = arith.constant 2 : i32
    return
  }
  func.func @transform_0(%arg0: i32, %arg1: memref<2x16xi32, #tpu.memory_space<smem>>) -> (i32, i32, i32) {
    %c0_i32 = arith.constant 0 : i32
    %c0_i32_0 = arith.constant 0 : i32
    %c0_i32_1 = arith.constant 0 : i32
    return %arg0, %c0_i32, %c0_i32_0 : i32, i32, i32
  }
  func.func @transform_1(%arg0: i32, %arg1: memref<2x16xi32, #tpu.memory_space<smem>>) -> (i32, i32) {
    %c0_i32 = arith.constant 0 : i32
    %c0_i32_0 = arith.constant 0 : i32
    %c0_i32_1 = arith.constant 0 : i32
    return %c0_i32, %c0_i32_0 : i32, i32
  }
  func.func @transform_2(%arg0: i32, %arg1: memref<2x16xi32, #tpu.memory_space<smem>>) -> (i32, i32) {
    %c0_i32 = arith.constant 0 : i32
    %c0_i32_0 = arith.constant 0 : i32
    %c0_i32_1 = arith.constant 0 : i32
    return %c0_i32, %c0_i32_0 : i32, i32
  }
  func.func @transform_3(%arg0: i32, %arg1: memref<2x16xi32, #tpu.memory_space<smem>>) -> (i32, i32) {
    %c0_i32 = arith.constant 0 : i32
    %c0_i32_0 = arith.constant 0 : i32
    %c0_i32_1 = arith.constant 0 : i32
    return %c0_i32, %c0_i32_0 : i32, i32
  }
  func.func @transform_4(%arg0: i32, %arg1: memref<2x16xi32, #tpu.memory_space<smem>>) -> (i32, i32) {
    %c0_i32 = arith.constant 0 : i32
    %c0_i32_0 = arith.constant 0 : i32
    %c0_i32_1 = arith.constant 0 : i32
    return %c0_i32, %c0_i32_0 : i32, i32
  }
  func.func @transform_6(%arg0: i32, %arg1: memref<2x16xi32, #tpu.memory_space<smem>>) -> (i32, i32, i32) {
    %c0_i32 = arith.constant 0 : i32
    %c0_i32_0 = arith.constant 0 : i32
    %c0_i32_1 = arith.constant 0 : i32
    return %arg0, %c0_i32, %c0_i32_0 : i32, i32, i32
  }
}

</mosaic_0001>

<llo_original>
// kernel: tpu_custom_call.1
$region0: #{tpu_custom_call.1}
  #allocation0 [shape = 'u32[]', space=smem, size = 0x4, offset = 0x4, fixed_abs, tag = 'smem constant byte address 0x4 - core index']
  #allocation1 [shape = 'u32[144,128]{1,0:T(1,128)}', space=vmem, size = 0x12000, scoped, tag = 'internal scratch']
  #allocation2 [shape = 'f32[2,8,128]{2,1,0:T(8,128)}', space=vmem, size = 0x2000, scoped, tag = 'scratch operand']
  #allocation3 [shape = 's32[16]{0}', space=sflag, size = 0x40, scoped, tag = 'scratch operand']
  #allocation4 [shape = 'f32[16,128]{1,0:T(8,128)}', space=vmem, size = 0x2000, scoped, tag = 'scratch operand']
  #allocation5 [shape = 's32[1]{0}', space=sflag, size = 0x4, scoped, tag = 'scoped memory for tpu_custom_call.1']
  #allocation6 [shape = 'u8[1024]{0}', space=smem, size = 0x400, scoped, tag = 'prefetched SMEM operand 0']
  #allocation9 [shape = 's32[]', space=sflag, size = 0x4, offset = 0, fixed_abs, tag = 'sflag constant byte address 0x0 - dummy sync flag']
  #allocation10 [shape = 's32[]', space=sflag, size = 0x4, offset = 0, fixed_abs, tag = 'sflag constant byte address 0x0 - dummy sync flag']
  #allocation11 [shape = 'u32[]', space=smem, size = 0x4, offset = 0x44, fixed_abs, tag = 'smem constant byte address 0x44 - assertion arg 0']
  #allocation12 [shape = 'u32[]', space=smem, size = 0x4, offset = 0x48, fixed_abs, tag = 'smem constant byte address 0x48 - assertion arg 1']
  #allocation13 [shape = 's32[]', space=sflag, size = 0x4, offset = 0, fixed_abs, tag = 'sflag constant byte address 0x0 - dummy sync flag']
  #allocation14 [shape = 's32[]', space=sflag, size = 0x4, offset = 0, fixed_abs, tag = 'sflag constant byte address 0x0 - dummy sync flag']
  #allocation15 [shape = 's32[]', space=sflag, size = 0x4, offset = 0, fixed_abs, tag = 'sflag constant byte address 0x0 - dummy sync flag']
  #allocation16 [shape = 's32[]', space=sflag, size = 0x4, offset = 0, fixed_abs, tag = 'sflag constant byte address 0x0 - dummy sync flag']
  #allocation17 [shape = 's32[]', space=sflag, size = 0x4, offset = 0, fixed_abs, tag = 'sflag constant byte address 0x0 - dummy sync flag']
  #allocation18 [shape = 's32[]', space=sflag, size = 0x4, offset = 0, fixed_abs, tag = 'sflag constant byte address 0x0 - dummy sync flag']
  #allocation19 [shape = 's32[]', space=sflag, size = 0x4, offset = 0, fixed_abs, tag = 'sflag constant byte address 0x0 - dummy sync flag']
  #allocation20 [shape = 's32[]', space=sflag, size = 0x4, offset = 0, fixed_abs, tag = 'sflag constant byte address 0x0 - dummy sync flag']
  #allocation21 [shape = 's32[]', space=sflag, size = 0x4, offset = 0, fixed_abs, tag = 'sflag constant byte address 0x0 - dummy sync flag']
  #allocation22 [shape = 's32[]', space=sflag, size = 0x4, offset = 0, fixed_abs, tag = 'sflag constant byte address 0x0 - dummy sync flag']
  #allocation23 [shape = 's32[]', space=sflag, size = 0x4, offset = 0, fixed_abs, tag = 'sflag constant byte address 0x0 - dummy sync flag']
  #allocation24 [shape = 's32[]', space=sflag, size = 0x4, offset = 0, fixed_abs, tag = 'sflag constant byte address 0x0 - dummy sync flag']
  #allocation25 [shape = 's32[]', space=sflag, size = 0x4, offset = 0, fixed_abs, tag = 'sflag constant byte address 0x0 - dummy sync flag']
  #allocation26 [shape = 's32[]', space=sflag, size = 0x4, offset = 0, fixed_abs, tag = 'sflag constant byte address 0x0 - dummy sync flag']
  #allocation27 [shape = 's32[]', space=sflag, size = 0x4, offset = 0, fixed_abs, tag = 'sflag constant byte address 0x0 - dummy sync flag']
  #allocation28 [shape = 's32[]', space=sflag, size = 0x4, offset = 0, fixed_abs, tag = 'sflag constant byte address 0x0 - dummy sync flag']
  #allocation29 [shape = 's32[]', space=sflag, size = 0x4, offset = 0, fixed_abs, tag = 'sflag constant byte address 0x0 - dummy sync flag']
  #allocation30 [shape = 's32[]', space=sflag, size = 0x4, offset = 0, fixed_abs, tag = 'sflag constant byte address 0x0 - dummy sync flag']
  #allocation31 [shape = 's32[]', space=sflag, size = 0x4, offset = 0, fixed_abs, tag = 'sflag constant byte address 0x0 - dummy sync flag']
  #allocation32 [shape = 's32[]', space=sflag, size = 0x4, offset = 0, fixed_abs, tag = 'sflag constant byte address 0x0 - dummy sync flag']
  #allocation33 [shape = 's32[]', space=sflag, size = 0x4, offset = 0, fixed_abs, tag = 'sflag constant byte address 0x0 - dummy sync flag']
  #allocation34 [shape = 's32[]', space=sflag, size = 0x4, offset = 0, fixed_abs, tag = 'sflag constant byte address 0x0 - dummy sync flag']
  #allocation35 [shape = 's32[]', space=sflag, size = 0x4, offset = 0, fixed_abs, tag = 'sflag constant byte address 0x0 - dummy sync flag']
  #allocation36 [shape = 's32[]', space=sflag, size = 0x4, offset = 0, fixed_abs, tag = 'sflag constant byte address 0x0 - dummy sync flag']
  #allocation37 [shape = 's32[]', space=sflag, size = 0x4, offset = 0, fixed_abs, tag = 'sflag constant byte address 0x0 - dummy sync flag']
  #allocation38 [shape = 's32[]', space=sflag, size = 0x4, offset = 0, fixed_abs, tag = 'sflag constant byte address 0x0 - dummy sync flag']
  #allocation39 [shape = 's32[]', space=sflag, size = 0x4, offset = 0, fixed_abs, tag = 'sflag constant byte address 0x0 - dummy sync flag']
  #allocation40 [shape = 's32[]', space=sflag, size = 0x4, offset = 0, fixed_abs, tag = 'sflag constant byte address 0x0 - dummy sync flag']
  #allocation41 [shape = 's32[]', space=sflag, size = 0x4, offset = 0, fixed_abs, tag = 'sflag constant byte address 0x0 - dummy sync flag']
  #allocation42 [shape = 's32[]', space=sflag, size = 0x4, offset = 0, fixed_abs, tag = 'sflag constant byte address 0x0 - dummy sync flag']
  %s0 = inlined_call_operand.vmem [shape: s32[2,16], index: 0, kind: input, shape index: {}]
  %s1 = inlined_call_operand.vmem [shape: s32[2,16,1], index: 1, kind: input, shape index: {}]
  %s2 = inlined_call_operand.vmem [shape: f32[32,128], index: 2, kind: input, shape index: {}]
  %s3 = inlined_call_operand.vmem [shape: f32[2,128], index: 3, kind: input, shape index: {}]
  %s4 = inlined_call_operand.vmem [shape: f32[1,128], index: 4, kind: input, shape index: {}]
  %s5 = inlined_call_operand.vmem [shape: f32[1,128], index: 5, kind: input, shape index: {}]
  %s6 = inlined_call_operand.hbm [shape: f32[64,128], index: 6, kind: input, shape index: {}]
  %s7 = inlined_call_operand.hbm [shape: f32[2,16,128], index: 7, kind: output, shape index: {}]
  %s8 = sld [smem:[#allocation0]]
  $region128: #{tpu_custom_call.1} parent=0
    _
  %s10 = ssub.s32 1, %s8
  %s11 = scalar_select 0, %s10, %s8
  %s12 = sshll.u32 %s0, 4
  %s13 = int_to_ptr.vmem [resolvable:$true] %s12
  %15 = dma.vmem_to_smem %s13, 32, [#allocation6], [#allocation5]
  %16 = dma.done [#allocation5], 32
  %17 = sfence
  $region1: #{tpu_custom_call.1} parent=0
    #allocation7 [shape = 'u8[16384]{0}', space=vmem, size = 0x4000, scoped, tag = 'output window, operand 0']
    #allocation8 [shape = 's32[2]{0}', space=sflag, size = 0x8, scoped, tag = 'scoped memory for tpu_custom_call.1']
    %18 = vsyncpa [#allocation8], 0
    %s19 = scalar_lea.sflag [#allocation8], 1
    %20 = vsyncpa %s19, 0
    loop: start=0, step=1, limit=4
    $region2: #{tpu_custom_call.1} parent=1 // loop_pre_header
      _
    $region3: #{tpu_custom_call.1} parent=1 // loop_header
      %s22 = sphi 0, %s26
      %p23 = scmp.ge.s32.totalorder %s22, 4
      %s32 = sphi 0, %s34
      %s35 = sphi 0, %s32
      %s36 = sphi 0, %s35
      %s52 = sphi 0, %s36
      %s56 = sphi 0, %s56
      %s58 = sphi 0, %s56
      %s59 = sphi 0, %s58
      %s73 = sphi 0, %s59
      %s77 = sphi 0, %s77
      %s79 = sphi 0, %s77
      %s80 = sphi 0, %s79
      %s94 = sphi 0, %s80
      %s98 = sphi 0, %s98
      %s100 = sphi 0, %s98
      %s101 = sphi 0, %s100
      %s115 = sphi 0, %s101
      %s119 = sphi 0, %s119
      %s121 = sphi 0, %s119
      %s122 = sphi 0, %s121
      %s136 = sphi 0, %s122
      %s142 = sphi 0, %s144
      %s145 = sphi 0, %s142
      %s146 = sphi 0, %s145
      %s162 = sphi 0, %s146
    $region4: #{tpu_custom_call.1} parent=1 // loop_header_branch
      %25 = sbr.rel (%p23) target = $region8
    $region5: #{tpu_custom_call.1} parent=1 // loop_body
      %s27 = ssub.s32 %s22, 1
      %s28 = ssub.s32 %s22, 2
      %s29 = sadd.s32 %s22, 1
      %s30 = ssub.s32 %s22, %s29
      %p31 = scmp.eq.s32.totalorder %s30, 0
      %s33 = sadd.s32 %s32, 1
      %s34 = scalar_select %p31, %s32, %s33
      %p37 = pneg %p31
      %p38 = scmp.eq.s32.totalorder %s22, 1
      %p39 = por %p37, %p38
      %p40 = scmp.ne.s32.totalorder %s32, %s35
      %p41 = scmp.eq.s32.totalorder %s22, 0
      %p42 = por %p40, %p41
      %p43 = scmp.ne.s32.totalorder %s32, %s35
      %p44 = scmp.eq.s32.totalorder %s27, 1
      %p45 = por %p43, %p44
      %p46 = scmp.ne.s32.totalorder %s35, %s36
      %p47 = scmp.eq.s32.totalorder %s27, 0
      %p48 = por %p46, %p47
      %p49 = scmp.ne.s32.totalorder %s35, %s36
      %p50 = scmp.eq.s32.totalorder %s28, 1
      %p51 = por %p49, %p50
      %p53 = scmp.ne.s32.totalorder %s36, %s52
      %p54 = scmp.eq.s32.totalorder %s28, 0
      %p55 = por %p53, %p54
      %s57 = sadd.s32 %s56, 1
      %p60 = scmp.eq.s32.totalorder %s22, 1
      %p61 = scmp.ne.s32.totalorder %s56, %s58
      %p62 = scmp.eq.s32.totalorder %s22, 0
      %p63 = por %p61, %p62
      %p64 = scmp.ne.s32.totalorder %s56, %s58
      %p65 = scmp.eq.s32.totalorder %s27, 1
      %p66 = por %p64, %p65
      %p67 = scmp.ne.s32.totalorder %s58, %s59
      %p68 = scmp.eq.s32.totalorder %s27, 0
      %p69 = por %p67, %p68
      %p70 = scmp.ne.s32.totalorder %s58, %s59
      %p71 = scmp.eq.s32.totalorder %s28, 1
      %p72 = por %p70, %p71
      %p74 = scmp.ne.s32.totalorder %s59, %s73
      %p75 = scmp.eq.s32.totalorder %s28, 0
      %p76 = por %p74, %p75
      %s78 = sadd.s32 %s77, 1
      %p81 = scmp.eq.s32.totalorder %s22, 1
      %p82 = scmp.ne.s32.totalorder %s77, %s79
      %p83 = scmp.eq.s32.totalorder %s22, 0
      %p84 = por %p82, %p83
      %p85 = scmp.ne.s32.totalorder %s77, %s79
      %p86 = scmp.eq.s32.totalorder %s27, 1
      %p87 = por %p85, %p86
      %p88 = scmp.ne.s32.totalorder %s79, %s80
      %p89 = scmp.eq.s32.totalorder %s27, 0
      %p90 = por %p88, %p89
      %p91 = scmp.ne.s32.totalorder %s79, %s80
      %p92 = scmp.eq.s32.totalorder %s28, 1
      %p93 = por %p91, %p92
      %p95 = scmp.ne.s32.totalorder %s80, %s94
      %p96 = scmp.eq.s32.totalorder %s28, 0
      %p97 = por %p95, %p96
      %s99 = sadd.s32 %s98, 1
      %p102 = scmp.eq.s32.totalorder %s22, 1
      %p103 = scmp.ne.s32.totalorder %s98, %s100
      %p104 = scmp.eq.s32.totalorder %s22, 0
      %p105 = por %p103, %p104
      %p106 = scmp.ne.s32.totalorder %s98, %s100
      %p107 = scmp.eq.s32.totalorder %s27, 1
      %p108 = por %p106, %p107
      %p109 = scmp.ne.s32.totalorder %s100, %s101
      %p110 = scmp.eq.s32.totalorder %s27, 0
      %p111 = por %p109, %p110
      %p112 = scmp.ne.s32.totalorder %s100, %s101
      %p113 = scmp.eq.s32.totalorder %s28, 1
      %p114 = por %p112, %p113
      %p116 = scmp.ne.s32.totalorder %s101, %s115
      %p117 = scmp.eq.s32.totalorder %s28, 0
      %p118 = por %p116, %p117
      %s120 = sadd.s32 %s119, 1
      %p123 = scmp.eq.s32.totalorder %s22, 1
      %p124 = scmp.ne.s32.totalorder %s119, %s121
      %p125 = scmp.eq.s32.totalorder %s22, 0
      %p126 = por %p124, %p125
      %p127 = scmp.ne.s32.totalorder %s119, %s121
      %p128 = scmp.eq.s32.totalorder %s27, 1
      %p129 = por %p127, %p128
      %p130 = scmp.ne.s32.totalorder %s121, %s122
      %p131 = scmp.eq.s32.totalorder %s27, 0
      %p132 = por %p130, %p131
      %p133 = scmp.ne.s32.totalorder %s121, %s122
      %p134 = scmp.eq.s32.totalorder %s28, 1
      %p135 = por %p133, %p134
      %p137 = scmp.ne.s32.totalorder %s122, %s136
      %p138 = scmp.eq.s32.totalorder %s28, 0
      %p139 = por %p137, %p138
      %s140 = ssub.s32 %s22, %s29
      %p141 = scmp.eq.s32.totalorder %s140, 0
      %s143 = sadd.s32 %s142, 1
      %s144 = scalar_select %p141, %s142, %s143
      %p147 = pneg %p141
      %p148 = scmp.eq.s32.totalorder %s22, 1
      %p149 = por %p147, %p148
      %p150 = scmp.ne.s32.totalorder %s142, %s145
      %p151 = scmp.eq.s32.totalorder %s22, 0
      %p152 = por %p150, %p151
      %p153 = scmp.ne.s32.totalorder %s142, %s145
      %p154 = scmp.eq.s32.totalorder %s27, 1
      %p155 = por %p153, %p154
      %p156 = scmp.ne.s32.totalorder %s145, %s146
      %p157 = scmp.eq.s32.totalorder %s27, 0
      %p158 = por %p156, %p157
      %p159 = scmp.ne.s32.totalorder %s145, %s146
      %p160 = scmp.eq.s32.totalorder %s28, 1
      %p161 = por %p159, %p160
      %p163 = scmp.ne.s32.totalorder %s146, %s162
      %p164 = scmp.eq.s32.totalorder %s28, 0
      %p165 = por %p163, %p164
      %p166 = scmp.le.s32.totalorder 1, %s22
      %p167 = scmp.lt.s32.totalorder %s22, 3
      %p168 = pnand %p166, %p167
      %p169 = pneg %p168
      // Predicated region
      $region9: #{tpu_custom_call.1} parent=5 // pred_check
        _
      $region10: #{tpu_custom_call.1} parent=5 // pred_check_branch
        %171 = sbr.rel (%p168) target = $region12
      $region11: #{tpu_custom_call.1} parent=5 // pred_region
        %s172 = ssub.s32 %s22, 1
        // Predicated region
        $region13: #{tpu_custom_call.1} parent=11 // pred_check
          %p173 = pneg %p69
        $region14: #{tpu_custom_call.1} parent=11 // pred_check_branch
          %175 = sbr.rel (%p173) target = $region16
        $region15: #{tpu_custom_call.1} parent=11 // pred_region
          _
        $region16: #{tpu_custom_call.1} parent=11 // pred_fallthru
          _
        // Predicated region
        $region17: #{tpu_custom_call.1} parent=11 // pred_check
          %p176 = pneg %p90
        $region18: #{tpu_custom_call.1} parent=11 // pred_check_branch
          %178 = sbr.rel (%p176) target = $region20
        $region19: #{tpu_custom_call.1} parent=11 // pred_region
          _
        $region20: #{tpu_custom_call.1} parent=11 // pred_fallthru
          _
        // Predicated region
        $region21: #{tpu_custom_call.1} parent=11 // pred_check
          %p179 = pneg %p111
        $region22: #{tpu_custom_call.1} parent=11 // pred_check_branch
          %181 = sbr.rel (%p179) target = $region24
        $region23: #{tpu_custom_call.1} parent=11 // pred_region
          _
        $region24: #{tpu_custom_call.1} parent=11 // pred_fallthru
          _
        // Predicated region
        $region25: #{tpu_custom_call.1} parent=11 // pred_check
          %p182 = pneg %p132
        $region26: #{tpu_custom_call.1} parent=11 // pred_check_branch
          %184 = sbr.rel (%p182) target = $region28
        $region27: #{tpu_custom_call.1} parent=11 // pred_region
          _
        $region28: #{tpu_custom_call.1} parent=11 // pred_fallthru
          _
      $region12: #{tpu_custom_call.1} parent=5 // pred_fallthru
        _
      %p185 = scmp.lt.s32.totalorder %s22, 2
      // Predicated region
      $region29: #{tpu_custom_call.1} parent=5 // pred_check
        %p186 = pneg %p185
      $region30: #{tpu_custom_call.1} parent=5 // pred_check_branch
        %188 = sbr.rel (%p186) target = $region32
      $region31: #{tpu_custom_call.1} parent=5 // pred_region
        // Predicated region
        $region33: #{tpu_custom_call.1} parent=31 // pred_check
          %p189 = pneg %p42
        $region34: #{tpu_custom_call.1} parent=31 // pred_check_branch
          %191 = sbr.rel (%p189) target = $region36
        $region35: #{tpu_custom_call.1} parent=31 // pred_region
          %p192 = scmp.lt.s32.totalorder %s22, 1
          %s193 = scalar_select %p192, %s22, 1
          %s194 = smul.addr %s193, 2
          %s195 = smul.addr %s194, 8
          %s196 = scalar_lea.vmem %s1, %s195
        $region36: #{tpu_custom_call.1} parent=31 // pred_fallthru
          _
      $region32: #{tpu_custom_call.1} parent=5 // pred_fallthru
        _
      %p197 = scmp.le.s32.totalorder 1, %s22
      %p198 = scmp.lt.s32.totalorder %s22, 3
      %p199 = pnand %p197, %p198
      %p200 = pneg %p199
      // Predicated region
      $region37: #{tpu_custom_call.1} parent=5 // pred_check
        _
      $region38: #{tpu_custom_call.1} parent=5 // pred_check_branch
        %202 = sbr.rel (%p199) target = $region40
      $region39: #{tpu_custom_call.1} parent=5 // pred_region
        %s203 = ssub.s32 %s22, 1
        %p204 = scmp.lt.s32.totalorder %s27, 1
        %s205 = scalar_select %p204, %s27, 1
        %s206 = smul.addr %s205, 2
        %s207 = smul.addr %s206, 8
        %s208 = scalar_lea.vmem %s1, %s207
        %p209 = pneg %p48
        %p210 = pneg %p45
        %p211 = pneg %p69
        %p212 = pneg %p66
        %p213 = pneg %p90
        %p214 = pneg %p87
        %p215 = pneg %p111
        %p216 = pneg %p108
        %p217 = pneg %p132
        %p218 = pneg %p129
        %p219 = pneg %p158
        %p220 = pneg %p155
        %s221 = sand.u32 %s145, 1
        %s222 = scalar_lea.sflag [#allocation8], %s221
        %s223 = sand.u32 %s145, 1
        %s224 = smul.addr %s223, 16
        %s225 = scalar_lea.vmem [#allocation7], %s224
        %p226 = scmp.lt.s32.totalorder %s27, 1
        %s227 = scalar_select %p226, %s27, 1
        %s228 = smul.addr %s227, 2
        %s229 = smul.addr %s228, 8
        %s230 = scalar_lea.vmem %s1, %s229
        %s231 = smul.u32 %s27, 128
        %s232 = sld [smem:[#allocation6 + %s231]]
        %p233 = scmp.gt.s32.totalorder %s232, 0
        %s234 = scalar_select %p233, %s232, 0
        %p235 = scmp.lt.s32.totalorder %s234, 63
        %s236 = scalar_select %p235, %s234, 63
        %s237 = smul.addr %s236, 16
        %s238 = scalar_lea.hbm %s6, %s237
        // Predicated region
        $region41: #{tpu_custom_call.1} parent=39 // pred_check
          _
        $region42: #{tpu_custom_call.1} parent=39 // pred_check_branch
          %240 = sbr.rel target = $region44
        $region43: #{tpu_custom_call.1} parent=39 // pred_region
          %241 = sst [smem:[#allocation11]] [#allocation10]
          %242 = sst [smem:[#allocation12]] [#allocation9]
        $region44: #{tpu_custom_call.1} parent=39 // pred_fallthru
          _
        %244 = shalt.err (0)
        %s246 = sshll.u32 [#allocation2], 4
        %s247 = int_to_ptr.vmem [resolvable:$true] %s246
        %249 = dma.hbm_to_vmem [thread:$0]  %s238, 16, %s247, [#allocation3]
        %s250 = sadd.s32 %s231, 1
        %s251 = sld [smem:[#allocation6 + %s250]]
        %p252 = scmp.gt.s32.totalorder %s251, 0
        %s253 = scalar_select %p252, %s251, 0
        %p254 = scmp.lt.s32.totalorder %s253, 63
        %s255 = scalar_select %p254, %s253, 63
        %s256 = smul.addr %s255, 16
        %s257 = scalar_lea.hbm %s6, %s256
        %s258 = scalar_lea.vmem [#allocation2], 1
        %s259 = scalar_lea.sflag [#allocation3], 1
        // Predicated region
        $region45: #{tpu_custom_call.1} parent=39 // pred_check
          _
        $region46: #{tpu_custom_call.1} parent=39 // pred_check_branch
          %261 = sbr.rel target = $region48
        $region47: #{tpu_custom_call.1} parent=39 // pred_region
          %262 = sst [smem:[#allocation11]] [#allocation14]
          %263 = sst [smem:[#allocation12]] [#allocation13]
        $region48: #{tpu_custom_call.1} parent=39 // pred_fallthru
          _
        %265 = shalt.err (0)
        %s267 = sshll.u32 %s258, 4
        %s268 = int_to_ptr.vmem [resolvable:$true] %s267
        %270 = dma.hbm_to_vmem [thread:$0]  %s257, 16, %s268, %s259
        %s271 = sadd.s32 %s231, 2
        %s272 = sld [smem:[#allocation6 + %s271]]
        %p273 = scmp.gt.s32.totalorder %s272, 0
        %s274 = scalar_select %p273, %s272, 0
        %p275 = scmp.lt.s32.totalorder %s274, 63
        %s276 = scalar_select %p275, %s274, 63
        %s277 = smul.addr %s276, 16
        %s278 = scalar_lea.hbm %s6, %s277
        %s279 = scalar_lea.vmem [#allocation2], 2
        %s280 = scalar_lea.sflag [#allocation3], 2
        // Predicated region
        $region49: #{tpu_custom_call.1} parent=39 // pred_check
          _
        $region50: #{tpu_custom_call.1} parent=39 // pred_check_branch
          %282 = sbr.rel target = $region52
        $region51: #{tpu_custom_call.1} parent=39 // pred_region
          %283 = sst [smem:[#allocation11]] [#allocation16]
          %284 = sst [smem:[#allocation12]] [#allocation15]
        $region52: #{tpu_custom_call.1} parent=39 // pred_fallthru
          _
        %286 = shalt.err (0)
        %s288 = sshll.u32 %s279, 4
        %s289 = int_to_ptr.vmem [resolvable:$true] %s288
        %291 = dma.hbm_to_vmem [thread:$0]  %s278, 16, %s289, %s280
        %s292 = sadd.s32 %s231, 3
        %s293 = sld [smem:[#allocation6 + %s292]]
        %p294 = scmp.gt.s32.totalorder %s293, 0
        %s295 = scalar_select %p294, %s293, 0
        %p296 = scmp.lt.s32.totalorder %s295, 63
        %s297 = scalar_select %p296, %s295, 63
        %s298 = smul.addr %s297, 16
        %s299 = scalar_lea.hbm %s6, %s298
        %s300 = scalar_lea.vmem [#allocation2], 3
        %s301 = scalar_lea.sflag [#allocation3], 3
        // Predicated region
        $region53: #{tpu_custom_call.1} parent=39 // pred_check
          _
        $region54: #{tpu_custom_call.1} parent=39 // pred_check_branch
          %303 = sbr.rel target = $region56
        $region55: #{tpu_custom_call.1} parent=39 // pred_region
          %304 = sst [smem:[#allocation11]] [#allocation18]
          %305 = sst [smem:[#allocation12]] [#allocation17]
        $region56: #{tpu_custom_call.1} parent=39 // pred_fallthru
          _
        %307 = shalt.err (0)
        %s309 = sshll.u32 %s300, 4
        %s310 = int_to_ptr.vmem [resolvable:$true] %s309
        %312 = dma.hbm_to_vmem [thread:$0]  %s299, 16, %s310, %s301
        %s313 = sadd.s32 %s231, 4
        %s314 = sld [smem:[#allocation6 + %s313]]
        %p315 = scmp.gt.s32.totalorder %s314, 0
        %s316 = scalar_select %p315, %s314, 0
        %p317 = scmp.lt.s32.totalorder %s316, 63
        %s318 = scalar_select %p317, %s316, 63
        %s319 = smul.addr %s318, 16
        %s320 = scalar_lea.hbm %s6, %s319
        %s321 = scalar_lea.vmem [#allocation2], 4
        %s322 = scalar_lea.sflag [#allocation3], 4
        // Predicated region
        $region57: #{tpu_custom_call.1} parent=39 // pred_check
          _
        $region58: #{tpu_custom_call.1} parent=39 // pred_check_branch
          %324 = sbr.rel target = $region60
        $region59: #{tpu_custom_call.1} parent=39 // pred_region
          %325 = sst [smem:[#allocation11]] [#allocation20]
          %326 = sst [smem:[#allocation12]] [#allocation19]
        $region60: #{tpu_custom_call.1} parent=39 // pred_fallthru
          _
        %328 = shalt.err (0)
        %s330 = sshll.u32 %s321, 4
        %s331 = int_to_ptr.vmem [resolvable:$true] %s330
        %333 = dma.hbm_to_vmem [thread:$0]  %s320, 16, %s331, %s322
        %s334 = sadd.s32 %s231, 5
        %s335 = sld [smem:[#allocation6 + %s334]]
        %p336 = scmp.gt.s32.totalorder %s335, 0
        %s337 = scalar_select %p336, %s335, 0
        %p338 = scmp.lt.s32.totalorder %s337, 63
        %s339 = scalar_select %p338, %s337, 63
        %s340 = smul.addr %s339, 16
        %s341 = scalar_lea.hbm %s6, %s340
        %s342 = scalar_lea.vmem [#allocation2], 5
        %s343 = scalar_lea.sflag [#allocation3], 5
        // Predicated region
        $region61: #{tpu_custom_call.1} parent=39 // pred_check
          _
        $region62: #{tpu_custom_call.1} parent=39 // pred_check_branch
          %345 = sbr.rel target = $region64
        $region63: #{tpu_custom_call.1} parent=39 // pred_region
          %346 = sst [smem:[#allocation11]] [#allocation22]
          %347 = sst [smem:[#allocation12]] [#allocation21]
        $region64: #{tpu_custom_call.1} parent=39 // pred_fallthru
          _
        %349 = shalt.err (0)
        %s351 = sshll.u32 %s342, 4
        %s352 = int_to_ptr.vmem [resolvable:$true] %s351
        %354 = dma.hbm_to_vmem [thread:$0]  %s341, 16, %s352, %s343
        %s355 = sadd.s32 %s231, 6
        %s356 = sld [smem:[#allocation6 + %s355]]
        %p357 = scmp.gt.s32.totalorder %s356, 0
        %s358 = scalar_select %p357, %s356, 0
        %p359 = scmp.lt.s32.totalorder %s358, 63
        %s360 = scalar_select %p359, %s358, 63
        %s361 = smul.addr %s360, 16
        %s362 = scalar_lea.hbm %s6, %s361
        %s363 = scalar_lea.vmem [#allocation2], 6
        %s364 = scalar_lea.sflag [#allocation3], 6
        // Predicated region
        $region65: #{tpu_custom_call.1} parent=39 // pred_check
          _
        $region66: #{tpu_custom_call.1} parent=39 // pred_check_branch
          %366 = sbr.rel target = $region68
        $region67: #{tpu_custom_call.1} parent=39 // pred_region
          %367 = sst [smem:[#allocation11]] [#allocation24]
          %368 = sst [smem:[#allocation12]] [#allocation23]
        $region68: #{tpu_custom_call.1} parent=39 // pred_fallthru
          _
        %370 = shalt.err (0)
        %s372 = sshll.u32 %s363, 4
        %s373 = int_to_ptr.vmem [resolvable:$true] %s372
        %375 = dma.hbm_to_vmem [thread:$0]  %s362, 16, %s373, %s364
        %s376 = sadd.s32 %s231, 7
        %s377 = sld [smem:[#allocation6 + %s376]]
        %p378 = scmp.gt.s32.totalorder %s377, 0
        %s379 = scalar_select %p378, %s377, 0
        %p380 = scmp.lt.s32.totalorder %s379, 63
        %s381 = scalar_select %p380, %s379, 63
        %s382 = smul.addr %s381, 16
        %s383 = scalar_lea.hbm %s6, %s382
        %s384 = scalar_lea.vmem [#allocation2], 7
        %s385 = scalar_lea.sflag [#allocation3], 7
        // Predicated region
        $region69: #{tpu_custom_call.1} parent=39 // pred_check
          _
        $region70: #{tpu_custom_call.1} parent=39 // pred_check_branch
          %387 = sbr.rel target = $region72
        $region71: #{tpu_custom_call.1} parent=39 // pred_region
          %388 = sst [smem:[#allocation11]] [#allocation26]
          %389 = sst [smem:[#allocation12]] [#allocation25]
        $region72: #{tpu_custom_call.1} parent=39 // pred_fallthru
          _
        %391 = shalt.err (0)
        %s393 = sshll.u32 %s384, 4
        %s394 = int_to_ptr.vmem [resolvable:$true] %s393
        %396 = dma.hbm_to_vmem [thread:$0]  %s383, 16, %s394, %s385
        %v397 = vld [vmem:[%s230] sm:$0xff]
        %v398 = vld [vmem:[%s230 + $0x8] sm:$0xff]
        %v399 = vld [vmem:[%s2] sm:$0xff]
        %v400 = vld [vmem:[%s2 + $0x8] sm:$0xff]
        %vm401 = vcmp.eq.s32.totalorder %v397, 0
        %vm402 = vcmp.eq.s32.totalorder %v398, 0
        %v403 = vsel %vm401, 1, 0
        %v404 = vsel %vm402, 1, 0
        %v405 = vcvt.s32.f32 %v403
        %v406 = vcvt.s32.f32 %v404
        %v407 = vld [vmem:[%s3] sm:$0x1]
        %409 = vset.pattern.permute.xlu0 0
        %410 = vperm.xlu0 %409, %v405
        %v411 = vpop.permute.xlu0 %410
        %414 = vset.pattern.permute.xlu0 0
        %415 = vperm.xlu0 %414, %v406
        %v416 = vpop.permute.xlu0 %415
        %v418 = vlaneseq
        %v419 = vshrl.u32 %v418, 7
        %v420 = vsub.s32 0, %v419
        %v421 = vrot.slane %v407, %v420
        %v422 = vmul.f32 %v411, %v421
        %v423 = vmul.f32 %v416, %v421
        %v424 = vadd.f32 %v399, %v422
        %v425 = vadd.f32 %v400, %v423
        %vm426 = vcmp.eq.s32.totalorder %v397, 1
        %vm427 = vcmp.eq.s32.totalorder %v398, 1
        %v428 = vsel %vm426, 1, 0
        %v429 = vsel %vm427, 1, 0
        %v430 = vcvt.s32.f32 %v428
        %v431 = vcvt.s32.f32 %v429
        %v432 = vld [vmem:[%s3 + $0x1] sm:$0x1]
        %434 = vset.pattern.permute.xlu0 0
        %435 = vperm.xlu0 %434, %v430
        %v436 = vpop.permute.xlu0 %435
        %439 = vset.pattern.permute.xlu0 0
        %440 = vperm.xlu0 %439, %v431
        %v441 = vpop.permute.xlu0 %440
        %v443 = vlaneseq
        %v444 = vshrl.u32 %v443, 7
        %v445 = vsub.s32 0, %v444
        %v446 = vrot.slane %v432, %v445
        %v447 = vmul.f32 %v436, %v446
        %v448 = vmul.f32 %v441, %v446
        %v449 = vadd.f32 %v424, %v447
        %v450 = vadd.f32 %v425, %v448
        %451 = vst [vmem:[#allocation4] sm:$0xff] %v449
        %452 = vst [vmem:[#allocation4 + $0x8] sm:$0xff] %v450
        %v453 = vld [vmem:[%s4] sm:$0x1]
        %v454 = vld [vmem:[%s5] sm:$0x1]
        loop: start=0, step=1, limit=2
        $region73: #{tpu_custom_call.1} parent=39 // loop_pre_header
          _
        $region74: #{tpu_custom_call.1} parent=39 // loop_header
          %s456 = sphi 0, %s460
          %p457 = scmp.ge.s32.totalorder %s456, 2
        $region75: #{tpu_custom_call.1} parent=39 // loop_header_branch
          %459 = sbr.rel (%p457) target = $region79
        $region76: #{tpu_custom_call.1} parent=39 // loop_body
          %p461 = scmp.lt.s32.totalorder %s456, 0
          %s462 = ssub.s32 0, %s456
          %s463 = scalar_select %p461, %s462, %s456
          %s464 = sand.u32 %s463, 1
          %s465 = ssub.s32 0, %s464
          %s466 = scalar_select %p461, %s465, %s464
          %s467 = smul.u32 %s466, 8
          %s468 = scalar_lea.sflag [#allocation3], %s467
          %s469 = smul.u32 1, 1
          %s470 = sshll.u32 %s469, 4
          %471 = dma.done %s468, %s470
          %s472 = sadd.s32 1, %s467
          %s473 = scalar_lea.sflag [#allocation3], %s472
          %s474 = sshll.u32 %s469, 4
          %475 = dma.done %s473, %s474
          %s476 = sadd.s32 2, %s467
          %s477 = scalar_lea.sflag [#allocation3], %s476
          %s478 = sshll.u32 %s469, 4
          %479 = dma.done %s477, %s478
          %s480 = sadd.s32 3, %s467
          %s481 = scalar_lea.sflag [#allocation3], %s480
          %s482 = sshll.u32 %s469, 4
          %483 = dma.done %s481, %s482
          %s484 = sadd.s32 4, %s467
          %s485 = scalar_lea.sflag [#allocation3], %s484
          %s486 = sshll.u32 %s469, 4
          %487 = dma.done %s485, %s486
          %s488 = sadd.s32 5, %s467
          %s489 = scalar_lea.sflag [#allocation3], %s488
          %s490 = sshll.u32 %s469, 4
          %491 = dma.done %s489, %s490
          %s492 = sadd.s32 6, %s467
          %s493 = scalar_lea.sflag [#allocation3], %s492
          %s494 = sshll.u32 %s469, 4
          %495 = dma.done %s493, %s494
          %s496 = sadd.s32 7, %s467
          %s497 = scalar_lea.sflag [#allocation3], %s496
          %s498 = sshll.u32 %s469, 4
          %499 = dma.done %s497, %s498
          %s500 = sadd.s32 %s456, 1
          %p501 = scmp.lt.s32.totalorder %s500, 2
          // Predicated region
          $region80: #{tpu_custom_call.1} parent=76 // pred_check
            %p502 = pneg %p501
          $region81: #{tpu_custom_call.1} parent=76 // pred_check_branch
            %504 = sbr.rel (%p502) target = $region83
          $region82: #{tpu_custom_call.1} parent=76 // pred_region
            %s505 = ssub.s32 1, %s466
            %s506 = smul.u32 %s500, 8
            %s507 = sshra.s32 %s506, 7
            %s508 = sand.u32 %s506, 127
            %s509 = sadd.s32 %s507, %s27
            %s510 = smul.u32 %s509, 128
            %s511 = sshra.s32 %s506, 7
            %s512 = sand.u32 %s506, 127
            %s513 = sadd.s32 %s510, %s512
            %s514 = sld [smem:[#allocation6 + %s513]]
            %p515 = scmp.gt.s32.totalorder %s514, 0
            %s516 = scalar_select %p515, %s514, 0
            %p517 = scmp.lt.s32.totalorder %s516, 63
            %s518 = scalar_select %p517, %s516, 63
            %s519 = smul.addr %s518, 16
            %s520 = scalar_lea.hbm %s6, %s519
            %s521 = smul.u32 %s505, 8
            %s522 = scalar_lea.vmem [#allocation2], %s521
            %s523 = scalar_lea.sflag [#allocation3], %s521
            // Predicated region
            $region84: #{tpu_custom_call.1} parent=82 // pred_check
              _
            $region85: #{tpu_custom_call.1} parent=82 // pred_check_branch
              %525 = sbr.rel target = $region87
            $region86: #{tpu_custom_call.1} parent=82 // pred_region
              %526 = sst [smem:[#allocation11]] [#allocation28]
              %527 = sst [smem:[#allocation12]] [#allocation27]
            $region87: #{tpu_custom_call.1} parent=82 // pred_fallthru
              _
            %529 = shalt.err (0)
            %s531 = sshll.u32 %s522, 4
            %s532 = int_to_ptr.vmem [resolvable:$true] %s531
            %534 = dma.hbm_to_vmem [thread:$0]  %s520, 16, %s532, %s523
            %s535 = sadd.s32 %s506, 1
            %s536 = sshra.s32 %s535, 7
            %s537 = sand.u32 %s535, 127
            %s538 = sadd.s32 %s536, %s27
            %s539 = smul.u32 %s538, 128
            %s540 = sshra.s32 %s535, 7
            %s541 = sand.u32 %s535, 127
            %s542 = sadd.s32 %s539, %s541
            %s543 = sld [smem:[#allocation6 + %s542]]
            %p544 = scmp.gt.s32.totalorder %s543, 0
            %s545 = scalar_select %p544, %s543, 0
            %p546 = scmp.lt.s32.totalorder %s545, 63
            %s547 = scalar_select %p546, %s545, 63
            %s548 = smul.addr %s547, 16
            %s549 = scalar_lea.hbm %s6, %s548
            %s550 = sadd.s32 1, %s521
            %s551 = scalar_lea.vmem [#allocation2], %s550
            %s552 = scalar_lea.sflag [#allocation3], %s550
            // Predicated region
            $region88: #{tpu_custom_call.1} parent=82 // pred_check
              _
            $region89: #{tpu_custom_call.1} parent=82 // pred_check_branch
              %554 = sbr.rel target = $region91
            $region90: #{tpu_custom_call.1} parent=82 // pred_region
              %555 = sst [smem:[#allocation11]] [#allocation30]
              %556 = sst [smem:[#allocation12]] [#allocation29]
            $region91: #{tpu_custom_call.1} parent=82 // pred_fallthru
              _
            %558 = shalt.err (0)
            %s560 = sshll.u32 %s551, 4
            %s561 = int_to_ptr.vmem [resolvable:$true] %s560
            %563 = dma.hbm_to_vmem [thread:$0]  %s549, 16, %s561, %s552
            %s564 = sadd.s32 %s506, 2
            %s565 = sshra.s32 %s564, 7
            %s566 = sand.u32 %s564, 127
            %s567 = sadd.s32 %s565, %s27
            %s568 = smul.u32 %s567, 128
            %s569 = sshra.s32 %s564, 7
            %s570 = sand.u32 %s564, 127
            %s571 = sadd.s32 %s568, %s570
            %s572 = sld [smem:[#allocation6 + %s571]]
            %p573 = scmp.gt.s32.totalorder %s572, 0
            %s574 = scalar_select %p573, %s572, 0
            %p575 = scmp.lt.s32.totalorder %s574, 63
            %s576 = scalar_select %p575, %s574, 63
            %s577 = smul.addr %s576, 16
            %s578 = scalar_lea.hbm %s6, %s577
            %s579 = sadd.s32 2, %s521
            %s580 = scalar_lea.vmem [#allocation2], %s579
            %s581 = scalar_lea.sflag [#allocation3], %s579
            // Predicated region
            $region92: #{tpu_custom_call.1} parent=82 // pred_check
              _
            $region93: #{tpu_custom_call.1} parent=82 // pred_check_branch
              %583 = sbr.rel target = $region95
            $region94: #{tpu_custom_call.1} parent=82 // pred_region
              %584 = sst [smem:[#allocation11]] [#allocation32]
              %585 = sst [smem:[#allocation12]] [#allocation31]
            $region95: #{tpu_custom_call.1} parent=82 // pred_fallthru
              _
            %587 = shalt.err (0)
            %s589 = sshll.u32 %s580, 4
            %s590 = int_to_ptr.vmem [resolvable:$true] %s589
            %592 = dma.hbm_to_vmem [thread:$0]  %s578, 16, %s590, %s581
            %s593 = sadd.s32 %s506, 3
            %s594 = sshra.s32 %s593, 7
            %s595 = sand.u32 %s593, 127
            %s596 = sadd.s32 %s594, %s27
            %s597 = smul.u32 %s596, 128
            %s598 = sshra.s32 %s593, 7
            %s599 = sand.u32 %s593, 127
            %s600 = sadd.s32 %s597, %s599
            %s601 = sld [smem:[#allocation6 + %s600]]
            %p602 = scmp.gt.s32.totalorder %s601, 0
            %s603 = scalar_select %p602, %s601, 0
            %p604 = scmp.lt.s32.totalorder %s603, 63
            %s605 = scalar_select %p604, %s603, 63
            %s606 = smul.addr %s605, 16
            %s607 = scalar_lea.hbm %s6, %s606
            %s608 = sadd.s32 3, %s521
            %s609 = scalar_lea.vmem [#allocation2], %s608
            %s610 = scalar_lea.sflag [#allocation3], %s608
            // Predicated region
            $region96: #{tpu_custom_call.1} parent=82 // pred_check
              _
            $region97: #{tpu_custom_call.1} parent=82 // pred_check_branch
              %612 = sbr.rel target = $region99
            $region98: #{tpu_custom_call.1} parent=82 // pred_region
              %613 = sst [smem:[#allocation11]] [#allocation34]
              %614 = sst [smem:[#allocation12]] [#allocation33]
            $region99: #{tpu_custom_call.1} parent=82 // pred_fallthru
              _
            %616 = shalt.err (0)
            %s618 = sshll.u32 %s609, 4
            %s619 = int_to_ptr.vmem [resolvable:$true] %s618
            %621 = dma.hbm_to_vmem [thread:$0]  %s607, 16, %s619, %s610
            %s622 = sadd.s32 %s506, 4
            %s623 = sshra.s32 %s622, 7
            %s624 = sand.u32 %s622, 127
            %s625 = sadd.s32 %s623, %s27
            %s626 = smul.u32 %s625, 128
            %s627 = sshra.s32 %s622, 7
            %s628 = sand.u32 %s622, 127
            %s629 = sadd.s32 %s626, %s628
            %s630 = sld [smem:[#allocation6 + %s629]]
            %p631 = scmp.gt.s32.totalorder %s630, 0
            %s632 = scalar_select %p631, %s630, 0
            %p633 = scmp.lt.s32.totalorder %s632, 63
            %s634 = scalar_select %p633, %s632, 63
            %s635 = smul.addr %s634, 16
            %s636 = scalar_lea.hbm %s6, %s635
            %s637 = sadd.s32 4, %s521
            %s638 = scalar_lea.vmem [#allocation2], %s637
            %s639 = scalar_lea.sflag [#allocation3], %s637
            // Predicated region
            $region100: #{tpu_custom_call.1} parent=82 // pred_check
              _
            $region101: #{tpu_custom_call.1} parent=82 // pred_check_branch
              %641 = sbr.rel target = $region103
            $region102: #{tpu_custom_call.1} parent=82 // pred_region
              %642 = sst [smem:[#allocation11]] [#allocation36]
              %643 = sst [smem:[#allocation12]] [#allocation35]
            $region103: #{tpu_custom_call.1} parent=82 // pred_fallthru
              _
            %645 = shalt.err (0)
            %s647 = sshll.u32 %s638, 4
            %s648 = int_to_ptr.vmem [resolvable:$true] %s647
            %650 = dma.hbm_to_vmem [thread:$0]  %s636, 16, %s648, %s639
            %s651 = sadd.s32 %s506, 5
            %s652 = sshra.s32 %s651, 7
            %s653 = sand.u32 %s651, 127
            %s654 = sadd.s32 %s652, %s27
            %s655 = smul.u32 %s654, 128
            %s656 = sshra.s32 %s651, 7
            %s657 = sand.u32 %s651, 127
            %s658 = sadd.s32 %s655, %s657
            %s659 = sld [smem:[#allocation6 + %s658]]
            %p660 = scmp.gt.s32.totalorder %s659, 0
            %s661 = scalar_select %p660, %s659, 0
            %p662 = scmp.lt.s32.totalorder %s661, 63
            %s663 = scalar_select %p662, %s661, 63
            %s664 = smul.addr %s663, 16
            %s665 = scalar_lea.hbm %s6, %s664
            %s666 = sadd.s32 5, %s521
            %s667 = scalar_lea.vmem [#allocation2], %s666
            %s668 = scalar_lea.sflag [#allocation3], %s666
            // Predicated region
            $region104: #{tpu_custom_call.1} parent=82 // pred_check
              _
            $region105: #{tpu_custom_call.1} parent=82 // pred_check_branch
              %670 = sbr.rel target = $region107
            $region106: #{tpu_custom_call.1} parent=82 // pred_region
              %671 = sst [smem:[#allocation11]] [#allocation38]
              %672 = sst [smem:[#allocation12]] [#allocation37]
            $region107: #{tpu_custom_call.1} parent=82 // pred_fallthru
              _
            %674 = shalt.err (0)
            %s676 = sshll.u32 %s667, 4
            %s677 = int_to_ptr.vmem [resolvable:$true] %s676
            %679 = dma.hbm_to_vmem [thread:$0]  %s665, 16, %s677, %s668
            %s680 = sadd.s32 %s506, 6
            %s681 = sshra.s32 %s680, 7
            %s682 = sand.u32 %s680, 127
            %s683 = sadd.s32 %s681, %s27
            %s684 = smul.u32 %s683, 128
            %s685 = sshra.s32 %s680, 7
            %s686 = sand.u32 %s680, 127
            %s687 = sadd.s32 %s684, %s686
            %s688 = sld [smem:[#allocation6 + %s687]]
            %p689 = scmp.gt.s32.totalorder %s688, 0
            %s690 = scalar_select %p689, %s688, 0
            %p691 = scmp.lt.s32.totalorder %s690, 63
            %s692 = scalar_select %p691, %s690, 63
            %s693 = smul.addr %s692, 16
            %s694 = scalar_lea.hbm %s6, %s693
            %s695 = sadd.s32 6, %s521
            %s696 = scalar_lea.vmem [#allocation2], %s695
            %s697 = scalar_lea.sflag [#allocation3], %s695
            // Predicated region
            $region108: #{tpu_custom_call.1} parent=82 // pred_check
              _
            $region109: #{tpu_custom_call.1} parent=82 // pred_check_branch
              %699 = sbr.rel target = $region111
            $region110: #{tpu_custom_call.1} parent=82 // pred_region
              %700 = sst [smem:[#allocation11]] [#allocation40]
              %701 = sst [smem:[#allocation12]] [#allocation39]
            $region111: #{tpu_custom_call.1} parent=82 // pred_fallthru
              _
            %703 = shalt.err (0)
            %s705 = sshll.u32 %s696, 4
            %s706 = int_to_ptr.vmem [resolvable:$true] %s705
            %708 = dma.hbm_to_vmem [thread:$0]  %s694, 16, %s706, %s697
            %s709 = sadd.s32 %s506, 7
            %s710 = sshra.s32 %s709, 7
            %s711 = sand.u32 %s709, 127
            %s712 = sadd.s32 %s710, %s27
            %s713 = smul.u32 %s712, 128
            %s714 = sshra.s32 %s709, 7
            %s715 = sand.u32 %s709, 127
            %s716 = sadd.s32 %s713, %s715
            %s717 = sld [smem:[#allocation6 + %s716]]
            %p718 = scmp.gt.s32.totalorder %s717, 0
            %s719 = scalar_select %p718, %s717, 0
            %p720 = scmp.lt.s32.totalorder %s719, 63
            %s721 = scalar_select %p720, %s719, 63
            %s722 = smul.addr %s721, 16
            %s723 = scalar_lea.hbm %s6, %s722
            %s724 = sadd.s32 7, %s521
            %s725 = scalar_lea.vmem [#allocation2], %s724
            %s726 = scalar_lea.sflag [#allocation3], %s724
            // Predicated region
            $region112: #{tpu_custom_call.1} parent=82 // pred_check
              _
            $region113: #{tpu_custom_call.1} parent=82 // pred_check_branch
              %728 = sbr.rel target = $region115
            $region114: #{tpu_custom_call.1} parent=82 // pred_region
              %729 = sst [smem:[#allocation11]] [#allocation42]
              %730 = sst [smem:[#allocation12]] [#allocation41]
            $region115: #{tpu_custom_call.1} parent=82 // pred_fallthru
              _
            %732 = shalt.err (0)
            %s734 = sshll.u32 %s725, 4
            %s735 = int_to_ptr.vmem [resolvable:$true] %s734
            %737 = dma.hbm_to_vmem [thread:$0]  %s723, 16, %s735, %s726
          $region83: #{tpu_custom_call.1} parent=76 // pred_fallthru
            _
          %s738 = smul.u32 %s456, 8
          %s739 = scalar_lea.vmem [#allocation2], %s467
          %v740 = vld [vmem:[%s739] sm:$0xff]
          %s741 = scalar_lea.vmem [#allocation4], %s738
          %v742 = vld [vmem:[%s741] sm:$0xff]
          %v743 = vadd.f32 %v740, %v742
          %744 = vadd.xlane.f32.xlu0 %v743
          %v745 = vpop.xlane.xlu0 %744
          %v746 = vrcp.pop 128.0
          %v747 = vmul.f32 %v745, %v746
          %v748 = vsub.f32 %v743, %v747
          %v749 = vmul.f32 %v748, %v748
          %750 = vadd.xlane.f32.xlu0 %v749
          %v751 = vpop.xlane.xlu0 %750
          %v752 = vmul.f32 %v751, %v746
          %v753 = vadd.f32 %v752, 1e-12
          %v754 = vrsqrt.pop %v753
          %v755 = vmul.f32 %v748, %v754
          %v757 = vlaneseq
          %v758 = vshrl.u32 %v757, 7
          %v759 = vsub.s32 0, %v758
          %v760 = vrot.slane %v453, %v759
          %v762 = vmul.f32 %v755, %v760
          %v764 = vlaneseq
          %v765 = vshrl.u32 %v764, 7
          %v766 = vsub.s32 0, %v765
          %v767 = vrot.slane %v454, %v766
          %v769 = vadd.f32 %v762, %v767
          %s770 = scalar_lea.vmem %s225, %s738 [#allocation7]
          %771 = vst [vmem:[%s770] sm:$0xff] %v769
        $region77: #{tpu_custom_call.1} parent=39 // loop_footer
          %s460 = sadd.s32 1, %s456
        $region78: #{tpu_custom_call.1} parent=39 // loop_footer_branch
          %455 = sbr.rel target = $region74
        $region79: #{tpu_custom_call.1} parent=39 // loop_exit
          _
        %s772 = sand.u32 %s145, 1
        %s773 = scalar_lea.sflag [#allocation8], %s772
        %s774 = sand.u32 %s145, 1
        %s775 = smul.addr %s774, 16
        %s776 = scalar_lea.vmem [#allocation7], %s775
        // Predicated region
        $region116: #{tpu_custom_call.1} parent=39 // pred_check
          %p777 = pneg %p155
        $region117: #{tpu_custom_call.1} parent=39 // pred_check_branch
          %779 = sbr.rel (%p777) target = $region119
        $region118: #{tpu_custom_call.1} parent=39 // pred_region
          %s781 = ssub.s32 256, 256
          %782 = vsyncadd %s773, %s781
          %s783 = smul.addr %s27, 2
          %s784 = smul.addr %s783, 128
          %s785 = scalar_lea.hbm %s7, %s784
          %s786 = sshll.u32 %s776, 4
          %s787 = int_to_ptr.vmem [resolvable:$true] %s786
          %792 = dma.vmem_to_hbm [thread:$0]  %s787, 256, %s785, %s773, 128, 128, 8
        $region119: #{tpu_custom_call.1} parent=39 // pred_fallthru
          _
      $region40: #{tpu_custom_call.1} parent=5 // pred_fallthru
        _
      %p793 = scmp.le.s32.totalorder 2, %s22
      // Predicated region
      $region120: #{tpu_custom_call.1} parent=5 // pred_check
        %p794 = pneg %p793
      $region121: #{tpu_custom_call.1} parent=5 // pred_check_branch
        %796 = sbr.rel (%p794) target = $region123
      $region122: #{tpu_custom_call.1} parent=5 // pred_region
        %s797 = ssub.s32 %s22, 2
        // Predicated region
        $region124: #{tpu_custom_call.1} parent=122 // pred_check
          %p798 = pneg %p161
        $region125: #{tpu_custom_call.1} parent=122 // pred_check_branch
          %800 = sbr.rel (%p798) target = $region127
        $region126: #{tpu_custom_call.1} parent=122 // pred_region
          %s801 = sand.u32 %s146, 1
          %s802 = scalar_lea.sflag [#allocation8], %s801
          %s803 = sand.u32 %s146, 1
          %s804 = smul.addr %s803, 16
          %s805 = scalar_lea.vmem [#allocation7], %s804
          %806 = dma.done %s802, 256
        $region127: #{tpu_custom_call.1} parent=122 // pred_fallthru
          _
      $region123: #{tpu_custom_call.1} parent=5 // pred_fallthru
        _
    $region6: #{tpu_custom_call.1} parent=1 // loop_footer
      %s26 = sadd.s32 1, %s22
    $region7: #{tpu_custom_call.1} parent=1 // loop_footer_branch
      %21 = sbr.rel target = $region3
    $region8: #{tpu_custom_call.1} parent=1 // loop_exit
      _
    %807 = vsyncpa [#allocation8], 1
    %s808 = scalar_lea.sflag [#allocation8], 1
    %809 = vsyncpa %s808, 1
  %810 = vsyncmov [#allocation3]
  %s811 = vpop.sfrf %810
  %p812 = scmp.eq.s32.totalorder %s811, 0
  %p813 = pneg %p812
  %815 = shalt.err (%p813)
  %s816 = scalar_lea.sflag [#allocation3], 1
  %817 = vsyncmov %s816
  %s818 = vpop.sfrf %817
  %p819 = scmp.eq.s32.totalorder %s818, 0
  %p820 = pneg %p819
  %822 = shalt.err (%p820)
  %s823 = scalar_lea.sflag [#allocation3], 2
  %824 = vsyncmov %s823
  %s825 = vpop.sfrf %824
  %p826 = scmp.eq.s32.totalorder %s825, 0
  %p827 = pneg %p826
  %829 = shalt.err (%p827)
  %s830 = scalar_lea.sflag [#allocation3], 3
  %831 = vsyncmov %s830
  %s832 = vpop.sfrf %831
  %p833 = scmp.eq.s32.totalorder %s832, 0
  %p834 = pneg %p833
  %836 = shalt.err (%p834)
  %s837 = scalar_lea.sflag [#allocation3], 4
  %838 = vsyncmov %s837
  %s839 = vpop.sfrf %838
  %p840 = scmp.eq.s32.totalorder %s839, 0
  %p841 = pneg %p840
  %843 = shalt.err (%p841)
  %s844 = scalar_lea.sflag [#allocation3], 5
  %845 = vsyncmov %s844
  %s846 = vpop.sfrf %845
  %p847 = scmp.eq.s32.totalorder %s846, 0
  %p848 = pneg %p847
  %850 = shalt.err (%p848)
  %s851 = scalar_lea.sflag [#allocation3], 6
  %852 = vsyncmov %s851
  %s853 = vpop.sfrf %852
  %p854 = scmp.eq.s32.totalorder %s853, 0
  %p855 = pneg %p854
  %857 = shalt.err (%p855)
  %s858 = scalar_lea.sflag [#allocation3], 7
  %859 = vsyncmov %s858
  %s860 = vpop.sfrf %859
  %p861 = scmp.eq.s32.totalorder %s860, 0
  %p862 = pneg %p861
  %864 = shalt.err (%p862)
  %s865 = scalar_lea.sflag [#allocation3], 8
  %866 = vsyncmov %s865
  %s867 = vpop.sfrf %866
  %p868 = scmp.eq.s32.totalorder %s867, 0
  %p869 = pneg %p868
  %871 = shalt.err (%p869)
  %s872 = scalar_lea.sflag [#allocation3], 9
  %873 = vsyncmov %s872
  %s874 = vpop.sfrf %873
  %p875 = scmp.eq.s32.totalorder %s874, 0
  %p876 = pneg %p875
  %878 = shalt.err (%p876)
  %s879 = scalar_lea.sflag [#allocation3], 10
  %880 = vsyncmov %s879
  %s881 = vpop.sfrf %880
  %p882 = scmp.eq.s32.totalorder %s881, 0
  %p883 = pneg %p882
  %885 = shalt.err (%p883)
  %s886 = scalar_lea.sflag [#allocation3], 11
  %887 = vsyncmov %s886
  %s888 = vpop.sfrf %887
  %p889 = scmp.eq.s32.totalorder %s888, 0
  %p890 = pneg %p889
  %892 = shalt.err (%p890)
  %s893 = scalar_lea.sflag [#allocation3], 12
  %894 = vsyncmov %s893
  %s895 = vpop.sfrf %894
  %p896 = scmp.eq.s32.totalorder %s895, 0
  %p897 = pneg %p896
  %899 = shalt.err (%p897)
  %s900 = scalar_lea.sflag [#allocation3], 13
  %901 = vsyncmov %s900
  %s902 = vpop.sfrf %901
  %p903 = scmp.eq.s32.totalorder %s902, 0
  %p904 = pneg %p903
  %906 = shalt.err (%p904)
  %s907 = scalar_lea.sflag [#allocation3], 14
  %908 = vsyncmov %s907
  %s909 = vpop.sfrf %908
  %p910 = scmp.eq.s32.totalorder %s909, 0
  %p911 = pneg %p910
  %913 = shalt.err (%p911)
  %s914 = scalar_lea.sflag [#allocation3], 15
  %915 = vsyncmov %s914
  %s916 = vpop.sfrf %915
  %p917 = scmp.eq.s32.totalorder %s916, 0
  %p918 = pneg %p917
  %920 = shalt.err (%p918)

</llo_original>
